<compile_context>
chip_gen: v5e
topology: v5e:2x2
jax: 0.10.0
libtpu: 0.0.40
codegen_flags: <defaults>
</compile_context>

<pallas_src>
import functools
import math

import jax
import jax.numpy as jnp
from jax.experimental import pallas as pl
from jax.experimental.pallas import tpu as pltpu


def _round_up(x, m):
    return ((x + m - 1) // m) * m


# ----------------------------------------------------------------------------
# Kernel
# ----------------------------------------------------------------------------
def _encoder_kernel(x_ref, w1_ref, b1_ref, w2_ref, b2_ref, wh_ref, bh_ref,
                    eps_ref, out_ref, acc_ref, *, zp):
    """Grid = (batch tiles, K tiles of dim_input); K is the reduction axis."""
    k = pl.program_id(1)

    @pl.when(k == 0)
    def _():
        # Fold the layer-1 bias into the accumulator init: saves a (tm, feat)
        # broadcast + VPU add in the epilogue (JAX does not CSE broadcasts).
        acc_ref[...] = jnp.broadcast_to(b1_ref[...], acc_ref.shape)

    # Layer 1: stream bf16 x / w1 K-tiles through the MXU, accumulate in f32.
    acc_ref[...] += jnp.dot(x_ref[...], w1_ref[...],
                            preferred_element_type=jnp.float32)

    @pl.when(k == pl.num_programs(1) - 1)
    def _():
        # Epilogue in f32 (v5e has no bf16 VPU/EUP path).
        h1 = jnp.maximum(acc_ref[...], 0.0)

        # Layer 2: Linear(F, H) + ReLU on the MXU (bf16 operands, f32 acc).
        h2 = jnp.dot(h1.astype(w2_ref.dtype), w2_ref[...],
                     preferred_element_type=jnp.float32) + b2_ref[...]
        h2 = jnp.maximum(h2, 0.0)

        # Fused heads: one (H, 2*ZP) matmul; cols [0:ZP)=loc, [ZP:2*ZP)=scale.
        heads = jnp.dot(h2.astype(wh_ref.dtype), wh_ref[...],
                        preferred_element_type=jnp.float32) + bh_ref[...]
        loc = heads[:, :zp]
        # Softplus (numerically stable) + 1e-7, then reparameterized sample.
        scale = jnp.logaddexp(heads[:, zp:], 0.0) + 1e-7
        z = loc + scale * eps_ref[...]

        # Three direct 128-aligned stores (no concatenated temporary).
        out_ref[:, :zp] = loc
        out_ref[:, zp:2 * zp] = scale
        out_ref[:, 2 * zp:] = z


# ----------------------------------------------------------------------------
# Generation-aware tile / VMEM configuration
# ----------------------------------------------------------------------------
def _vmem_capacity_bytes():
    try:
        info = pltpu.get_tpu_info()
        cap = getattr(info, "vmem_capacity_bytes", None)
        if cap:
            return int(cap)
    except Exception:
        pass
    return 64 << 20  # conservative fallback: v7x per-TC VMEM


def _vmem_bytes(tm, tk, feat, dim_h, zp):
    """Rough per-kernel VMEM footprint (default double buffering everywhere)."""
    stream = 2 * (tm * tk * 2 + tk * feat * 2)                  # x, w1 (bf16)
    resident = 2 * (feat * 4 + feat * dim_h * 2 + dim_h * 4     # b1, w2, b2
                    + dim_h * 2 * zp * 2 + 2 * zp * 4           # wh, bh
                    + tm * zp * 4)                              # eps
    out = 2 * tm * 3 * zp * 4
    acc = tm * feat * 4
    return stream + resident + out + acc


def _select_config(d_in, feat, dim_h, zp, max_batch):
    vmem_cap = _vmem_capacity_bytes()
    big_vmem = vmem_cap >= (96 << 20)           # v5e / v6e: 128 MiB physical
    vmem_limit = min((100 << 20) if big_vmem else (48 << 20),
                     max(vmem_cap - (8 << 20), 32 << 20))
    tm = min(512 if big_vmem else 256, _round_up(max(max_batch, 1), 8))
    tk = min(2048 if big_vmem else 1024, _round_up(d_in, 128))
    # Shrink tk (then tm) until the estimated footprint fits the limit.
    while tk > 128 and _vmem_bytes(tm, tk, feat, dim_h, zp) > vmem_limit:
        tk = _round_up(tk // 2, 128)
    while tm > 128 and _vmem_bytes(tm, tk, feat, dim_h, zp) > vmem_limit:
        tm = _round_up(tm // 2, 8)
    return tm, tk, vmem_limit


# ----------------------------------------------------------------------------
# One-time weight packing (hoisted out of the per-call path)
# ----------------------------------------------------------------------------
def pack_params(params, *, max_batch=512):
    """Cast / pad / fuse the weights ONCE; reuse the result for every call."""
    w1, b1 = params["w1"], params["b1"]
    w2, b2 = params["w2"], params["b2"]
    wloc, bloc = params["w_loc"], params["b_loc"]
    wsc, bsc = params["w_scale"], params["b_scale"]

    d_in, feat = w1.shape
    dim_h = w2.shape[1]
    z_dim = wloc.shape[1]
    zp = _round_up(max(z_dim, 1), 128)          # lane-dense padded head width

    tm_cap, tk, vmem_limit = _select_config(d_in, feat, dim_h, zp, max_batch)
    k_pad = _round_up(d_in, tk)

    bf = jnp.bfloat16
    w1_p = jnp.zeros((k_pad, feat), bf).at[:d_in, :].set(w1.astype(bf))
    w2_b = w2.astype(bf)

    # Fused, lane-padded head weights / biases: [loc | scale], each ZP wide.
    wh = jnp.zeros((dim_h, 2 * zp), bf)
    wh = wh.at[:, :z_dim].set(wloc.astype(bf))
    wh = wh.at[:, zp:zp + z_dim].set(wsc.astype(bf))
    bh = jnp.zeros((1, 2 * zp), jnp.float32)
    bh = bh.at[:, :z_dim].set(bloc.astype(jnp.float32))
    bh = bh.at[:, zp:zp + z_dim].set(bsc.astype(jnp.float32))

    packed = {
        "w1": w1_p, "b1": b1.astype(jnp.float32),
        "w2": w2_b, "b2": b2.astype(jnp.float32),
        "wh": wh, "bh": bh,
        "d_in": d_in, "feat": feat, "dim_h": dim_h,
        "z_dim": z_dim, "zp": zp,
        "tk": tk, "k_pad": k_pad, "tm_cap": tm_cap,
        "vmem_limit": vmem_limit,
    }
    jax.block_until_ready((w1_p, w2_b, wh, bh))
    return packed


# ----------------------------------------------------------------------------
# Per-call wrapper
# ----------------------------------------------------------------------------
def ls_encoder_dense(x_nchw, packed, eps):
    """Runs the fused encoder kernel with pre-packed weights.

    x_nchw : (B, C, H, W) float32 (or bf16)
    packed : output of pack_params
    eps    : (B, Z) float32 standard-normal noise for rsample
    Returns (loc, scale, z): (loc, scale) parameterize q_zd = Normal(loc, scale),
    z is the reparameterized sample zd_q.
    """
    b = x_nchw.shape[0]
    x_flat = x_nchw.reshape(b, -1)
    d_in, feat = packed["d_in"], packed["feat"]
    dim_h, z_dim, zp = packed["dim_h"], packed["z_dim"], packed["zp"]
    tk, k_pad = packed["tk"], packed["k_pad"]
    assert x_flat.shape[1] == d_in, "dim_input mismatch with packed weights"

    tm = min(packed["tm_cap"], _round_up(b, 8))
    b_pad = _round_up(b, tm)

    # Fast path on x / eps: single cast + (optional) pad, no zeros+scatter.
    x_bf = x_flat if x_flat.dtype == jnp.bfloat16 else x_flat.astype(jnp.bfloat16)
    if (b_pad, k_pad) != (b, d_in):
        x_bf = jnp.pad(x_bf, ((0, b_pad - b), (0, k_pad - d_in)))
    eps_f = eps.astype(jnp.float32)
    if (b_pad, zp) != (b, z_dim):
        eps_f = jnp.pad(eps_f, ((0, b_pad - b), (0, zp - z_dim)))

    grid = (b_pad // tm, k_pad // tk)
    kernel = functools.partial(_encoder_kernel, zp=zp)

    out = pl.pallas_call(
        kernel,
        out_shape=jax.ShapeDtypeStruct((b_pad, 3 * zp), jnp.float32),
        grid_spec=pltpu.PrefetchScalarGridSpec(
            num_scalar_prefetch=0,
            grid=grid,
            in_specs=[
                # x: tiled over (batch, K)
                pl.BlockSpec((tm, tk), lambda m, k: (m, k)),
                # w1: streamed over K, reused across batch tiles
                pl.BlockSpec((tk, feat), lambda m, k: (k, 0)),
                # small resident operands (grid-invariant)
                pl.BlockSpec((1, feat), lambda m, k: (0, 0)),
                pl.BlockSpec((feat, dim_h), lambda m, k: (0, 0)),
                pl.BlockSpec((1, dim_h), lambda m, k: (0, 0)),
                pl.BlockSpec((dim_h, 2 * zp), lambda m, k: (0, 0)),
                pl.BlockSpec((1, 2 * zp), lambda m, k: (0, 0)),
                # eps: per batch tile
                pl.BlockSpec((tm, zp), lambda m, k: (m, 0)),
            ],
            out_specs=pl.BlockSpec((tm, 3 * zp), lambda m, k: (m, 0)),
            scratch_shapes=[pltpu.VMEM((tm, feat), jnp.float32)],
        ),
        compiler_params=pltpu.CompilerParams(
            dimension_semantics=("parallel", "arbitrary"),
            vmem_limit_bytes=packed["vmem_limit"],
        ),
    )(x_bf, packed["w1"], packed["b1"], packed["w2"], packed["b2"],
      packed["wh"], packed["bh"], eps_f)

    loc = out[:b, :z_dim]
    scale = out[:b, zp:zp + z_dim]
    z = out[:b, 2 * zp:2 * zp + z_dim]
    return loc, scale, z


# ----------------------------------------------------------------------------
# Parameter init mirroring the module's __init__
# ----------------------------------------------------------------------------
def init_params(key, dim_input, feat_dim, dim_h, z_dim):
    """DenseNet linears: PyTorch default init; fc_loc/fc_scale: Xavier, zero bias.
    Weights stored as (in, out); biases as (1, out) for 2-D VMEM refs."""
    ks = jax.random.split(key, 6)

    def torch_default(k, fan_in, fan_out):
        bound = 1.0 / math.sqrt(fan_in)
        return jax.random.uniform(k, (fan_in, fan_out), jnp.float32, -bound, bound)

    def xavier(k, fan_in, fan_out):
        bound = math.sqrt(6.0 / (fan_in + fan_out))
        return jax.random.uniform(k, (fan_in, fan_out), jnp.float32, -bound, bound)

    return {
        "w1": torch_default(ks[0], dim_input, feat_dim),
        "b1": jax.random.uniform(ks[1], (1, feat_dim), jnp.float32,
                                 -1.0 / math.sqrt(dim_input), 1.0 / math.sqrt(dim_input)),
        "w2": torch_default(ks[2], feat_dim, dim_h),
        "b2": jax.random.uniform(ks[3], (1, dim_h), jnp.float32,
                                 -1.0 / math.sqrt(feat_dim), 1.0 / math.sqrt(feat_dim)),
        "w_loc": xavier(ks[4], dim_h, z_dim),
        "b_loc": jnp.zeros((1, z_dim), jnp.float32),
        "w_scale": xavier(ks[5], dim_h, z_dim),
        "b_scale": jnp.zeros((1, z_dim), jnp.float32),
    }


if __name__ == "__main__":
    # Small shapes consistent with the module: x is an image batch that gets
    # flattened, dim_input = C*H*W.
    B, C, H, W = 2, 4, 16, 16
    DIM_INPUT = C * H * W          # 1024
    FEAT_DIM = 256                 # DenseNet last_feat_dim (default 4096, shrunk)
    DIM_H = 128                    # out_hidden_size / dim_h
    Z_DIM = 32

    key = jax.random.PRNGKey(0)
    k_x, k_p, k_eps = jax.random.split(key, 3)

    x = jax.random.normal(k_x, (B, C, H, W), jnp.float32)
    params = init_params(k_p, DIM_INPUT, FEAT_DIM, DIM_H, Z_DIM)
    eps = jax.random.normal(k_eps, (B, Z_DIM), jnp.float32)

    # One-time weight packing (bf16 cast, K-padding, fused loc/scale heads).
    packed = pack_params(params, max_batch=B)

    # TODO(synk): dist.Normal object itself has no Pallas equivalent; we return
    # (loc, scale) which fully parameterize q_zd, plus the rsample zd_q.
    loc, scale, z_sample = ls_encoder_dense(x, packed, eps)
    jax.block_until_ready((loc, scale, z_sample))

    # Cross-check against a pure-JAX reference using the same bf16 operand
    # casts and f32 accumulation as the kernel.
    bf = jnp.bfloat16
    x_flat = x.reshape(B, -1)
    h1_ref = jnp.maximum(
        jnp.dot(x_flat.astype(bf), params["w1"].astype(bf),
                preferred_element_type=jnp.float32) + params["b1"], 0.0)
    h2_ref = jnp.maximum(
        jnp.dot(h1_ref.astype(bf), params["w2"].astype(bf),
                preferred_element_type=jnp.float32) + params["b2"], 0.0)
    loc_ref = jnp.dot(h2_ref.astype(bf), params["w_loc"].astype(bf),
                      preferred_element_type=jnp.float32) + params["b_loc"]
    pre_ref = jnp.dot(h2_ref.astype(bf), params["w_scale"].astype(bf),
                      preferred_element_type=jnp.float32) + params["b_scale"]
    scale_ref = jax.nn.softplus(pre_ref) + 1e-7
    z_ref = loc_ref + scale_ref * eps

    assert loc.shape == (B, Z_DIM) and scale.shape == (B, Z_DIM) and z_sample.shape == (B, Z_DIM)
    assert jnp.allclose(loc, loc_ref, atol=5e-3, rtol=5e-3)
    assert jnp.allclose(scale, scale_ref, atol=5e-3, rtol=5e-3)
    assert jnp.allclose(z_sample, z_ref, atol=5e-3, rtol=5e-3)
    assert bool(jnp.all(scale > 0.0))

    print("KERNEL_OK")
</pallas_src>

<mosaic_0001>
module attributes {stable_mosaic.version = 11 : i64} {
  func.func @_encoder_kernel(%arg0: i32, %arg1: i32, %arg2: memref<8x1024xbf16, #tpu.memory_space<vmem>>, %arg3: memref<1024x256xbf16, #tpu.memory_space<vmem>>, %arg4: memref<1x256xf32, #tpu.memory_space<vmem>>, %arg5: memref<256x128xbf16, #tpu.memory_space<vmem>>, %arg6: memref<1x128xf32, #tpu.memory_space<vmem>>, %arg7: memref<128x256xbf16, #tpu.memory_space<vmem>>, %arg8: memref<1x256xf32, #tpu.memory_space<vmem>>, %arg9: memref<8x128xf32, #tpu.memory_space<vmem>>, %arg10: memref<8x384xf32, #tpu.memory_space<vmem>>, %arg11: memref<8x256xf32, #tpu.memory_space<vmem>>) attributes {dimension_semantics = [#tpu.dimension_semantics<parallel>, #tpu.dimension_semantics<arbitrary>], iteration_bounds = array<i64: 1, 1>, scalar_prefetch = 0 : i64, scratch_operands = 1 : i64, tpu.core_type = #tpu.core_type<tc>, window_params = [{transform_indices = @transform_0, window_bounds = array<i64: 8, 1024>}, {transform_indices = @transform_1, window_bounds = array<i64: 1024, 256>}, {pipeline_mode = #tpu.pipeline_mode<synchronous>, transform_indices = @transform_2, window_bounds = array<i64: 1, 256>}, {pipeline_mode = #tpu.pipeline_mode<synchronous>, transform_indices = @transform_3, window_bounds = array<i64: 256, 128>}, {pipeline_mode = #tpu.pipeline_mode<synchronous>, transform_indices = @transform_4, window_bounds = array<i64: 1, 128>}, {pipeline_mode = #tpu.pipeline_mode<synchronous>, transform_indices = @transform_5, window_bounds = array<i64: 128, 256>}, {pipeline_mode = #tpu.pipeline_mode<synchronous>, transform_indices = @transform_6, window_bounds = array<i64: 1, 256>}, {transform_indices = @transform_7, window_bounds = array<i64: 8, 128>}, {transform_indices = @transform_8, window_bounds = array<i64: 8, 384>}]} {
    %c0_i32 = arith.constant 0 : i32
    %0 = arith.cmpi eq, %arg1, %c0_i32 : i32
    %1 = arith.extui %0 : i1 to i32
    %c0_i32_0 = arith.constant 0 : i32
    %2 = arith.cmpi ne, %1, %c0_i32_0 : i32
    scf.if %2 {
      %c0_10 = arith.constant 0 : index
      %c0_11 = arith.constant 0 : index
      %12 = vector.load %arg4[%c0_10, %c0_11] : memref<1x256xf32, #tpu.memory_space<vmem>>, vector<1x256xf32>
      %13 = vector.shape_cast %12 : vector<1x256xf32> to vector<1x256xf32>
      %14 = vector.broadcast %13 : vector<1x256xf32> to vector<8x256xf32>
      %c0_12 = arith.constant 0 : index
      %c0_13 = arith.constant 0 : index
      %15 = vector.load %arg11[%c0_12, %c0_13] : memref<8x256xf32, #tpu.memory_space<vmem>>, vector<8x256xf32>
      tpu.vector_store %arg11[%c0_12, %c0_13], %14 {strides = array<i32>} : memref<8x256xf32, #tpu.memory_space<vmem>>, vector<8x256xf32>,
    } else {
    }
    %c0 = arith.constant 0 : index
    %c0_1 = arith.constant 0 : index
    %3 = vector.load %arg11[%c0, %c0_1] : memref<8x256xf32, #tpu.memory_space<vmem>>, vector<8x256xf32>
    %c0_2 = arith.constant 0 : index
    %c0_3 = arith.constant 0 : index
    %4 = vector.load %arg2[%c0_2, %c0_3] : memref<8x1024xbf16, #tpu.memory_space<vmem>>, vector<8x1024xbf16>
    %c0_4 = arith.constant 0 : index
    %c0_5 = arith.constant 0 : index
    %5 = vector.load %arg3[%c0_4, %c0_5] : memref<1024x256xbf16, #tpu.memory_space<vmem>>, vector<1024x256xbf16>
    %cst = arith.constant dense<0.000000e+00> : vector<8x256xf32>
    %6 = tpu.matmul %4, %5, %cst {dimension_numbers = #tpu.dot_dimension_numbers<[1], [0], [0], [1], [0, 0, 1, 1], [], []>} : vector<8x1024xbf16>, vector<1024x256xbf16>, vector<8x256xf32> -> vector<8x256xf32>
    %7 = arith.addf %3, %6 : vector<8x256xf32>
    %c0_6 = arith.constant 0 : index
    %c0_7 = arith.constant 0 : index
    %8 = vector.load %arg11[%c0_6, %c0_7] : memref<8x256xf32, #tpu.memory_space<vmem>>, vector<8x256xf32>
    tpu.vector_store %arg11[%c0_6, %c0_7], %7 {strides = array<i32>} : memref<8x256xf32, #tpu.memory_space<vmem>>, vector<8x256xf32>,
    %c0_i32_8 = arith.constant 0 : i32
    %9 = arith.cmpi eq, %arg1, %c0_i32_8 : i32
    %10 = arith.extui %9 : i1 to i32
    %c0_i32_9 = arith.constant 0 : i32
    %11 = arith.cmpi ne, %10, %c0_i32_9 : i32
    scf.if %11 {
      %c0_10 = arith.constant 0 : index
      %c0_11 = arith.constant 0 : index
      %12 = vector.load %arg11[%c0_10, %c0_11] : memref<8x256xf32, #tpu.memory_space<vmem>>, vector<8x256xf32>
      %cst_12 = arith.constant 0.000000e+00 : f32
      %13 = vector.broadcast %cst_12 : f32 to vector<8x256xf32>
      %14 = arith.maximumf %12, %13 : vector<8x256xf32>
      %15 = arith.truncf %14 : vector<8x256xf32> to vector<8x256xbf16>
      %c0_13 = arith.constant 0 : index
      %c0_14 = arith.constant 0 : index
      %16 = vector.load %arg5[%c0_13, %c0_14] : memref<256x128xbf16, #tpu.memory_space<vmem>>, vector<256x128xbf16>
      %cst_15 = arith.constant dense<0.000000e+00> : vector<8x128xf32>
      %17 = tpu.matmul %15, %16, %cst_15 {dimension_numbers = #tpu.dot_dimension_numbers<[1], [0], [0], [1], [0, 0, 1, 1], [], []>} : vector<8x256xbf16>, vector<256x128xbf16>, vector<8x128xf32> -> vector<8x128xf32>
      %c0_16 = arith.constant 0 : index
      %c0_17 = arith.constant 0 : index
      %18 = vector.load %arg6[%c0_16, %c0_17] : memref<1x128xf32, #tpu.memory_space<vmem>>, vector<1x128xf32>
      %19 = vector.broadcast %18 : vector<1x128xf32> to vector<8x128xf32>
      %20 = arith.addf %17, %19 : vector<8x128xf32>
      %cst_18 = arith.constant 0.000000e+00 : f32
      %21 = vector.broadcast %cst_18 : f32 to vector<8x128xf32>
      %22 = arith.maximumf %20, %21 : vector<8x128xf32>
      %23 = arith.truncf %22 : vector<8x128xf32> to vector<8x128xbf16>
      %c0_19 = arith.constant 0 : index
      %c0_20 = arith.constant 0 : index
      %24 = vector.load %arg7[%c0_19, %c0_20] : memref<128x256xbf16, #tpu.memory_space<vmem>>, vector<128x256xbf16>
      %cst_21 = arith.constant dense<0.000000e+00> : vector<8x256xf32>
      %25 = tpu.matmul %23, %24, %cst_21 {dimension_numbers = #tpu.dot_dimension_numbers<[1], [0], [0], [1], [0, 0, 1, 1], [], []>} : vector<8x128xbf16>, vector<128x256xbf16>, vector<8x256xf32> -> vector<8x256xf32>
      %c0_22 = arith.constant 0 : index
      %c0_23 = arith.constant 0 : index
      %26 = vector.load %arg8[%c0_22, %c0_23] : memref<1x256xf32, #tpu.memory_space<vmem>>, vector<1x256xf32>
      %27 = vector.broadcast %26 : vector<1x256xf32> to vector<8x256xf32>
      %28 = arith.addf %25, %27 : vector<8x256xf32>
      %29 = vector.extract_strided_slice %28 {offsets = [0, 0], sizes = [8, 128], strides = [1, 1]} : vector<8x256xf32> to vector<8x128xf32>
      %30 = vector.extract_strided_slice %28 {offsets = [0, 128], sizes = [8, 128], strides = [1, 1]} : vector<8x256xf32> to vector<8x128xf32>
      %cst_24 = arith.constant 0.000000e+00 : f32
      %31 = vector.broadcast %cst_24 : f32 to vector<8x128xf32>
      %32 = arith.maximumf %30, %31 : vector<8x128xf32>
      %33 = vector.broadcast %cst_24 : f32 to vector<8x128xf32>
      %34 = arith.subf %30, %33 : vector<8x128xf32>
      %35 = arith.cmpf one, %34, %34 : vector<8x128xf32>
      %36 = vector.broadcast %cst_24 : f32 to vector<8x128xf32>
      %37 = arith.addf %30, %36 : vector<8x128xf32>
      %38 = math.absf %34 : vector<8x128xf32>
      %cst_25 = arith.constant 0.000000e+00 : f32
      %39 = vector.broadcast %cst_25 : f32 to vector<8x128xf32>
      %40 = arith.subf %39, %38 : vector<8x128xf32>
      %41 = math.exp %40 : vector<8x128xf32>
      %42 = math.log1p %41 : vector<8x128xf32>
      %43 = arith.addf %32, %42 : vector<8x128xf32>
      %44 = arith.select %35, %37, %43 : vector<8x128xi1>, vector<8x128xf32>
      %cst_26 = arith.constant 1.000000e-07 : f32
      %45 = vector.broadcast %cst_26 : f32 to vector<8x128xf32>
      %46 = arith.addf %44, %45 : vector<8x128xf32>
      %c0_27 = arith.constant 0 : index
      %c0_28 = arith.constant 0 : index
      %47 = vector.load %arg9[%c0_27, %c0_28] : memref<8x128xf32, #tpu.memory_space<vmem>>, vector<8x128xf32>
      %48 = arith.mulf %46, %47 : vector<8x128xf32>
      %49 = arith.addf %29, %48 : vector<8x128xf32>
      %c0_29 = arith.constant 0 : index
      %c0_30 = arith.constant 0 : index
      %50 = vector.load %arg10[%c0_29, %c0_30] : memref<8x384xf32, #tpu.memory_space<vmem>>, vector<8x128xf32>
      tpu.vector_store %arg10[%c0_29, %c0_30], %29 {strides = array<i32>} : memref<8x384xf32, #tpu.memory_space<vmem>>, vector<8x128xf32>,
      %c0_31 = arith.constant 0 : index
      %c128 = arith.constant 128 : index
      %51 = vector.load %arg10[%c0_31, %c128] : memref<8x384xf32, #tpu.memory_space<vmem>>, vector<8x128xf32>
      tpu.vector_store %arg10[%c0_31, %c128], %46 {strides = array<i32>} : memref<8x384xf32, #tpu.memory_space<vmem>>, vector<8x128xf32>,
      %c0_32 = arith.constant 0 : index
      %c256 = arith.constant 256 : index
      %52 = vector.load %arg10[%c0_32, %c256] : memref<8x384xf32, #tpu.memory_space<vmem>>, vector<8x128xf32>
      tpu.vector_store %arg10[%c0_32, %c256], %49 {strides = array<i32>} : memref<8x384xf32, #tpu.memory_space<vmem>>, vector<8x128xf32>,
    } else {
    }
    return
  }
  func.func @transform_0(%arg0: i32, %arg1: i32) -> (i32, i32) {
    %c0_i32 = arith.constant 0 : i32
    return %arg0, %arg1 : i32, i32
  }
  func.func @transform_1(%arg0: i32, %arg1: i32) -> (i32, i32) {
    %c0_i32 = arith.constant 0 : i32
    %c0_i32_0 = arith.constant 0 : i32
    return %arg1, %c0_i32 : i32, i32
  }
  func.func @transform_2(%arg0: i32, %arg1: i32) -> (i32, i32) {
    %c0_i32 = arith.constant 0 : i32
    %c0_i32_0 = arith.constant 0 : i32
    %c0_i32_1 = arith.constant 0 : i32
    return %c0_i32, %c0_i32_0 : i32, i32
  }
  func.func @transform_3(%arg0: i32, %arg1: i32) -> (i32, i32) {
    %c0_i32 = arith.constant 0 : i32
    %c0_i32_0 = arith.constant 0 : i32
    %c0_i32_1 = arith.constant 0 : i32
    return %c0_i32, %c0_i32_0 : i32, i32
  }
  func.func @transform_4(%arg0: i32, %arg1: i32) -> (i32, i32) {
    %c0_i32 = arith.constant 0 : i32
    %c0_i32_0 = arith.constant 0 : i32
    %c0_i32_1 = arith.constant 0 : i32
    return %c0_i32, %c0_i32_0 : i32, i32
  }
  func.func @transform_5(%arg0: i32, %arg1: i32) -> (i32, i32) {
    %c0_i32 = arith.constant 0 : i32
    %c0_i32_0 = arith.constant 0 : i32
    %c0_i32_1 = arith.constant 0 : i32
    return %c0_i32, %c0_i32_0 : i32, i32
  }
  func.func @transform_6(%arg0: i32, %arg1: i32) -> (i32, i32) {
    %c0_i32 = arith.constant 0 : i32
    %c0_i32_0 = arith.constant 0 : i32
    %c0_i32_1 = arith.constant 0 : i32
    return %c0_i32, %c0_i32_0 : i32, i32
  }
  func.func @transform_7(%arg0: i32, %arg1: i32) -> (i32, i32) {
    %c0_i32 = arith.constant 0 : i32
    %c0_i32_0 = arith.constant 0 : i32
    return %arg0, %c0_i32 : i32, i32
  }
  func.func @transform_8(%arg0: i32, %arg1: i32) -> (i32, i32) {
    %c0_i32 = arith.constant 0 : i32
    %c0_i32_0 = arith.constant 0 : i32
    return %arg0, %c0_i32 : i32, i32
  }
}

</mosaic_0001>

<llo_original>
// kernel: tpu_custom_call.1
$region0: #{tpu_custom_call.1}
  #allocation0 [shape = 'u32[]', space=smem, size = 0x4, offset = 0x4, fixed_abs, tag = 'smem constant byte address 0x4 - core index']
  #allocation1 [shape = 'u32[72,128]{1,0:T(1,128)}', space=vmem, size = 0x9000, scoped, tag = 'internal scratch']
  #allocation2 [shape = 'f32[8,256]{1,0:T(8,128)}', space=vmem, size = 0x2000, scoped, tag = 'scratch operand']
  %s0 = inlined_call_operand.hbm [shape: bf16[8,1024], index: 0, kind: input, shape index: {}]
  %s1 = inlined_call_operand.hbm [shape: bf16[1024,256], index: 1, kind: input, shape index: {}]
  %s2 = inlined_call_operand.hbm [shape: f32[1,256], index: 2, kind: input, shape index: {}]
  %s3 = inlined_call_operand.hbm [shape: bf16[256,128], index: 3, kind: input, shape index: {}]
  %s4 = inlined_call_operand.vmem [shape: f32[1,128], index: 4, kind: input, shape index: {}]
  %s5 = inlined_call_operand.hbm [shape: bf16[128,256], index: 5, kind: input, shape index: {}]
  %s6 = inlined_call_operand.vmem [shape: f32[1,256], index: 6, kind: input, shape index: {}]
  %s7 = inlined_call_operand.hbm [shape: f32[8,128], index: 7, kind: input, shape index: {}]
  %s8 = inlined_call_operand.hbm [shape: f32[8,384], index: 8, kind: output, shape index: {}]
  %s9 = sld [smem:[#allocation0]]
  $region74: #{tpu_custom_call.1} parent=0
    _
  %s11 = ssub.s32 1, %s9
  %s12 = scalar_select 0, %s11, %s9
  $region1: #{tpu_custom_call.1} parent=0
    #allocation3 [shape = 'u8[16384]{0}', space=vmem, size = 0x4000, scoped, tag = 'input window, operand 0, single buffered']
    #allocation4 [shape = 's32[1]{0}', space=sflag, size = 0x4, scoped, tag = 'scoped memory for tpu_custom_call.1']
    #allocation5 [shape = 's32[1]{0}', space=sflag, size = 0x4, scoped, tag = 'scoped memory for tpu_custom_call.1']
    #allocation6 [shape = 'u8[524288]{0}', space=vmem, size = 0x80000, scoped, tag = 'input window, operand 1, single buffered']
    #allocation7 [shape = 's32[1]{0}', space=sflag, size = 0x4, scoped, tag = 'scoped memory for tpu_custom_call.1']
    #allocation8 [shape = 'u8[1024]{0}', space=vmem, size = 0x400, scoped, tag = 'input window, operand 2, single buffered']
    #allocation9 [shape = 'u8[65536]{0}', space=vmem, size = 0x10000, scoped, tag = 'input window, operand 3, single buffered']
    #allocation10 [shape = 's32[1]{0}', space=sflag, size = 0x4, scoped, tag = 'scoped memory for tpu_custom_call.1']
    #allocation11 [shape = 'u8[65536]{0}', space=vmem, size = 0x10000, scoped, tag = 'input window, operand 5, single buffered']
    #allocation12 [shape = 'u8[4096]{0}', space=vmem, size = 0x1000, scoped, tag = 'input window, operand 7, single buffered']
    #allocation13 [shape = 's32[1]{0}', space=sflag, size = 0x4, scoped, tag = 'scoped memory for tpu_custom_call.1']
    #allocation14 [shape = 'u8[12288]{0}', space=vmem, size = 0x3000, scoped, tag = 'output window, operand 0, single buffered']
    %13 = vsyncpa [#allocation4], 0
    %14 = vsyncpa [#allocation7], 0
    %15 = vsyncpa [#allocation10], 0
    %16 = vsyncpa [#allocation13], 0
    %17 = vsyncpa [#allocation5], 0
    // Predicated region
    $region2: #{tpu_custom_call.1} parent=1 // pred_check
      _
    $region3: #{tpu_custom_call.1} parent=1 // pred_check_branch
      %19 = sbr.rel (0) target = $region5
    $region4: #{tpu_custom_call.1} parent=1 // pred_region
      %21 = vsyncadd [#allocation4], 0
      %s23 = sshll.u32 %s0, 4
      %s24 = int_to_ptr.hbm [resolvable:$true] %s23
      %s25 = sshll.u32 [#allocation3], 4
      %s26 = int_to_ptr.vmem [resolvable:$true] %s25
      %28 = dma.hbm_to_vmem [thread:$0]  %s24, 512, %s26, [#allocation4]
    $region5: #{tpu_custom_call.1} parent=1 // pred_fallthru
      _
    // Predicated region
    $region6: #{tpu_custom_call.1} parent=1 // pred_check
      _
    $region7: #{tpu_custom_call.1} parent=1 // pred_check_branch
      %30 = sbr.rel (0) target = $region9
    $region8: #{tpu_custom_call.1} parent=1 // pred_region
      %32 = vsyncadd [#allocation7], 0
      %s33 = sshll.u32 %s1, 4
      %s34 = int_to_ptr.hbm [resolvable:$true] %s33
      %s35 = sshll.u32 [#allocation6], 4
      %s36 = int_to_ptr.vmem [resolvable:$true] %s35
      %41 = dma.hbm_to_vmem [thread:$0]  %s34, 16384, %s36, [#allocation7], 128, 128, 8
    $region9: #{tpu_custom_call.1} parent=1 // pred_fallthru
      _
    // Predicated region
    $region10: #{tpu_custom_call.1} parent=1 // pred_check
      _
    $region11: #{tpu_custom_call.1} parent=1 // pred_check_branch
      %43 = sbr.rel (0) target = $region13
    $region12: #{tpu_custom_call.1} parent=1 // pred_region
      %45 = vsyncadd [#allocation7], 0
      %s47 = sshll.u32 %s2, 4
      %s48 = int_to_ptr.hbm [resolvable:$true] %s47
      %s49 = sshll.u32 [#allocation8], 4
      %s50 = int_to_ptr.vmem [resolvable:$true] %s49
      %52 = dma.hbm_to_vmem [thread:$0]  %s48, 32, %s50, [#allocation7]
    $region13: #{tpu_custom_call.1} parent=1 // pred_fallthru
      _
    // Predicated region
    $region14: #{tpu_custom_call.1} parent=1 // pred_check
      _
    $region15: #{tpu_custom_call.1} parent=1 // pred_check_branch
      %54 = sbr.rel (0) target = $region17
    $region16: #{tpu_custom_call.1} parent=1 // pred_region
      %56 = vsyncadd [#allocation10], 0
      %s57 = sshll.u32 %s3, 4
      %s58 = int_to_ptr.hbm [resolvable:$true] %s57
      %s59 = sshll.u32 [#allocation9], 4
      %s60 = int_to_ptr.vmem [resolvable:$true] %s59
      %65 = dma.hbm_to_vmem [thread:$0]  %s58, 2048, %s60, [#allocation10], 64, 64, 4
    $region17: #{tpu_custom_call.1} parent=1 // pred_fallthru
      _
    // Predicated region
    $region18: #{tpu_custom_call.1} parent=1 // pred_check
      _
    $region19: #{tpu_custom_call.1} parent=1 // pred_check_branch
      %67 = sbr.rel (0) target = $region21
    $region20: #{tpu_custom_call.1} parent=1 // pred_region
      _
    $region21: #{tpu_custom_call.1} parent=1 // pred_fallthru
      _
    // Predicated region
    $region22: #{tpu_custom_call.1} parent=1 // pred_check
      _
    $region23: #{tpu_custom_call.1} parent=1 // pred_check_branch
      %69 = sbr.rel (0) target = $region25
    $region24: #{tpu_custom_call.1} parent=1 // pred_region
      %71 = vsyncadd [#allocation10], 0
      %s72 = sshll.u32 %s5, 4
      %s73 = int_to_ptr.hbm [resolvable:$true] %s72
      %s74 = sshll.u32 [#allocation11], 4
      %s75 = int_to_ptr.vmem [resolvable:$true] %s74
      %80 = dma.hbm_to_vmem [thread:$0]  %s73, 2048, %s75, [#allocation10], 128, 128, 8
    $region25: #{tpu_custom_call.1} parent=1 // pred_fallthru
      _
    // Predicated region
    $region26: #{tpu_custom_call.1} parent=1 // pred_check
      _
    $region27: #{tpu_custom_call.1} parent=1 // pred_check_branch
      %82 = sbr.rel (0) target = $region29
    $region28: #{tpu_custom_call.1} parent=1 // pred_region
      _
    $region29: #{tpu_custom_call.1} parent=1 // pred_fallthru
      _
    // Predicated region
    $region30: #{tpu_custom_call.1} parent=1 // pred_check
      _
    $region31: #{tpu_custom_call.1} parent=1 // pred_check_branch
      %84 = sbr.rel (0) target = $region33
    $region32: #{tpu_custom_call.1} parent=1 // pred_region
      %86 = vsyncadd [#allocation13], 0
      %s88 = sshll.u32 %s7, 4
      %s89 = int_to_ptr.hbm [resolvable:$true] %s88
      %s90 = sshll.u32 [#allocation12], 4
      %s91 = int_to_ptr.vmem [resolvable:$true] %s90
      %93 = dma.hbm_to_vmem [thread:$0]  %s89, 128, %s91, [#allocation13]
    $region33: #{tpu_custom_call.1} parent=1 // pred_fallthru
      _
    // Predicated region
    $region34: #{tpu_custom_call.1} parent=1 // pred_check
      _
    $region35: #{tpu_custom_call.1} parent=1 // pred_check_branch
      %95 = sbr.rel (0) target = $region37
    $region36: #{tpu_custom_call.1} parent=1 // pred_region
      %97 = dma.done [#allocation4], 512
    $region37: #{tpu_custom_call.1} parent=1 // pred_fallthru
      _
    // Predicated region
    $region38: #{tpu_custom_call.1} parent=1 // pred_check
      _
    $region39: #{tpu_custom_call.1} parent=1 // pred_check_branch
      %99 = sbr.rel (0) target = $region41
    $region40: #{tpu_custom_call.1} parent=1 // pred_region
      %101 = dma.done [#allocation7], 16384
    $region41: #{tpu_custom_call.1} parent=1 // pred_fallthru
      _
    // Predicated region
    $region42: #{tpu_custom_call.1} parent=1 // pred_check
      _
    $region43: #{tpu_custom_call.1} parent=1 // pred_check_branch
      %103 = sbr.rel (0) target = $region45
    $region44: #{tpu_custom_call.1} parent=1 // pred_region
      %105 = dma.done [#allocation7], 32
    $region45: #{tpu_custom_call.1} parent=1 // pred_fallthru
      _
    // Predicated region
    $region46: #{tpu_custom_call.1} parent=1 // pred_check
      _
    $region47: #{tpu_custom_call.1} parent=1 // pred_check_branch
      %107 = sbr.rel (0) target = $region49
    $region48: #{tpu_custom_call.1} parent=1 // pred_region
      %109 = dma.done [#allocation10], 2048
    $region49: #{tpu_custom_call.1} parent=1 // pred_fallthru
      _
    // Predicated region
    $region50: #{tpu_custom_call.1} parent=1 // pred_check
      _
    $region51: #{tpu_custom_call.1} parent=1 // pred_check_branch
      %111 = sbr.rel (0) target = $region53
    $region52: #{tpu_custom_call.1} parent=1 // pred_region
      %113 = dma.done [#allocation10], 2048
    $region53: #{tpu_custom_call.1} parent=1 // pred_fallthru
      _
    // Predicated region
    $region54: #{tpu_custom_call.1} parent=1 // pred_check
      _
    $region55: #{tpu_custom_call.1} parent=1 // pred_check_branch
      %115 = sbr.rel (0) target = $region57
    $region56: #{tpu_custom_call.1} parent=1 // pred_region
      %117 = dma.done [#allocation13], 128
    $region57: #{tpu_custom_call.1} parent=1 // pred_fallthru
      _
    %p118 = scmp.eq.s32.totalorder 0, 0
    // Predicated region
    $region58: #{tpu_custom_call.1} parent=1 // pred_check
      %p119 = pneg %p118
    $region59: #{tpu_custom_call.1} parent=1 // pred_check_branch
      %121 = sbr.rel (%p119) target = $region61
    $region60: #{tpu_custom_call.1} parent=1 // pred_region
      %v122 = vld [vmem:[#allocation8] sm:$0x3]
      %v124 = vperm.slane %v122, 0
      %v125 = vperm.slane %v122, 1
      %128 = vst [vmem:[#allocation2] sm:$0xff] %v124
      %129 = vst [vmem:[#allocation2 + $0x8] sm:$0xff] %v125
    $region61: #{tpu_custom_call.1} parent=1 // pred_fallthru
      _
    %v130 = vld [vmem:[#allocation2] sm:$0xff]
    %v131 = vld [vmem:[#allocation2 + $0x8] sm:$0xff]
    %v132 = vld [vmem:[#allocation3] sm:$0xff]
    %v133 = vld [vmem:[#allocation3 + $0x8] sm:$0xff]
    %v134 = vld [vmem:[#allocation3 + $0x10] sm:$0xff]
    %v135 = vld [vmem:[#allocation3 + $0x18] sm:$0xff]
    %v136 = vld [vmem:[#allocation6] sm:$0xff]
    %v137 = vld [vmem:[#allocation6 + $0x8] sm:$0xff]
    %v138 = vld [vmem:[#allocation6 + $0x10] sm:$0xff]
    %v139 = vld [vmem:[#allocation6 + $0x18] sm:$0xff]
    %v140 = vld [vmem:[#allocation6 + $0x20] sm:$0xff]
    %v141 = vld [vmem:[#allocation6 + $0x28] sm:$0xff]
    %v142 = vld [vmem:[#allocation6 + $0x30] sm:$0xff]
    %v143 = vld [vmem:[#allocation6 + $0x38] sm:$0xff]
    %v144 = vld [vmem:[#allocation6 + $0x40] sm:$0xff]
    %v145 = vld [vmem:[#allocation6 + $0x48] sm:$0xff]
    %v146 = vld [vmem:[#allocation6 + $0x50] sm:$0xff]
    %v147 = vld [vmem:[#allocation6 + $0x58] sm:$0xff]
    %v148 = vld [vmem:[#allocation6 + $0x60] sm:$0xff]
    %v149 = vld [vmem:[#allocation6 + $0x68] sm:$0xff]
    %v150 = vld [vmem:[#allocation6 + $0x70] sm:$0xff]
    %v151 = vld [vmem:[#allocation6 + $0x78] sm:$0xff]
    %v152 = vld [vmem:[#allocation6 + $0x80] sm:$0xff]
    %v153 = vld [vmem:[#allocation6 + $0x88] sm:$0xff]
    %v154 = vld [vmem:[#allocation6 + $0x90] sm:$0xff]
    %v155 = vld [vmem:[#allocation6 + $0x98] sm:$0xff]
    %v156 = vld [vmem:[#allocation6 + $0xa0] sm:$0xff]
    %v157 = vld [vmem:[#allocation6 + $0xa8] sm:$0xff]
    %v158 = vld [vmem:[#allocation6 + $0xb0] sm:$0xff]
    %v159 = vld [vmem:[#allocation6 + $0xb8] sm:$0xff]
    %v160 = vld [vmem:[#allocation6 + $0xc0] sm:$0xff]
    %v161 = vld [vmem:[#allocation6 + $0xc8] sm:$0xff]
    %v162 = vld [vmem:[#allocation6 + $0xd0] sm:$0xff]
    %v163 = vld [vmem:[#allocation6 + $0xd8] sm:$0xff]
    %v164 = vld [vmem:[#allocation6 + $0xe0] sm:$0xff]
    %v165 = vld [vmem:[#allocation6 + $0xe8] sm:$0xff]
    %v166 = vld [vmem:[#allocation6 + $0xf0] sm:$0xff]
    %v167 = vld [vmem:[#allocation6 + $0xf8] sm:$0xff]
    %v168 = vld [vmem:[#allocation6 + $0x100] sm:$0xff]
    %v169 = vld [vmem:[#allocation6 + $0x108] sm:$0xff]
    %v170 = vld [vmem:[#allocation6 + $0x110] sm:$0xff]
    %v171 = vld [vmem:[#allocation6 + $0x118] sm:$0xff]
    %v172 = vld [vmem:[#allocation6 + $0x120] sm:$0xff]
    %v173 = vld [vmem:[#allocation6 + $0x128] sm:$0xff]
    %v174 = vld [vmem:[#allocation6 + $0x130] sm:$0xff]
    %v175 = vld [vmem:[#allocation6 + $0x138] sm:$0xff]
    %v176 = vld [vmem:[#allocation6 + $0x140] sm:$0xff]
    %v177 = vld [vmem:[#allocation6 + $0x148] sm:$0xff]
    %v178 = vld [vmem:[#allocation6 + $0x150] sm:$0xff]
    %v179 = vld [vmem:[#allocation6 + $0x158] sm:$0xff]
    %v180 = vld [vmem:[#allocation6 + $0x160] sm:$0xff]
    %v181 = vld [vmem:[#allocation6 + $0x168] sm:$0xff]
    %v182 = vld [vmem:[#allocation6 + $0x170] sm:$0xff]
    %v183 = vld [vmem:[#allocation6 + $0x178] sm:$0xff]
    %v184 = vld [vmem:[#allocation6 + $0x180] sm:$0xff]
    %v185 = vld [vmem:[#allocation6 + $0x188] sm:$0xff]
    %v186 = vld [vmem:[#allocation6 + $0x190] sm:$0xff]
    %v187 = vld [vmem:[#allocation6 + $0x198] sm:$0xff]
    %v188 = vld [vmem:[#allocation6 + $0x1a0] sm:$0xff]
    %v189 = vld [vmem:[#allocation6 + $0x1a8] sm:$0xff]
    %v190 = vld [vmem:[#allocation6 + $0x1b0] sm:$0xff]
    %v191 = vld [vmem:[#allocation6 + $0x1b8] sm:$0xff]
    %v192 = vld [vmem:[#allocation6 + $0x1c0] sm:$0xff]
    %v193 = vld [vmem:[#allocation6 + $0x1c8] sm:$0xff]
    %v194 = vld [vmem:[#allocation6 + $0x1d0] sm:$0xff]
    %v195 = vld [vmem:[#allocation6 + $0x1d8] sm:$0xff]
    %v196 = vld [vmem:[#allocation6 + $0x1e0] sm:$0xff]
    %v197 = vld [vmem:[#allocation6 + $0x1e8] sm:$0xff]
    %v198 = vld [vmem:[#allocation6 + $0x1f0] sm:$0xff]
    %v199 = vld [vmem:[#allocation6 + $0x1f8] sm:$0xff]
    %v200 = vld [vmem:[#allocation6 + $0x200] sm:$0xff]
    %v201 = vld [vmem:[#allocation6 + $0x208] sm:$0xff]
    %v202 = vld [vmem:[#allocation6 + $0x210] sm:$0xff]
    %v203 = vld [vmem:[#allocation6 + $0x218] sm:$0xff]
    %v204 = vld [vmem:[#allocation6 + $0x220] sm:$0xff]
    %v205 = vld [vmem:[#allocation6 + $0x228] sm:$0xff]
    %v206 = vld [vmem:[#allocation6 + $0x230] sm:$0xff]
    %v207 = vld [vmem:[#allocation6 + $0x238] sm:$0xff]
    %v208 = vld [vmem:[#allocation6 + $0x240] sm:$0xff]
    %v209 = vld [vmem:[#allocation6 + $0x248] sm:$0xff]
    %v210 = vld [vmem:[#allocation6 + $0x250] sm:$0xff]
    %v211 = vld [vmem:[#allocation6 + $0x258] sm:$0xff]
    %v212 = vld [vmem:[#allocation6 + $0x260] sm:$0xff]
    %v213 = vld [vmem:[#allocation6 + $0x268] sm:$0xff]
    %v214 = vld [vmem:[#allocation6 + $0x270] sm:$0xff]
    %v215 = vld [vmem:[#allocation6 + $0x278] sm:$0xff]
    %v216 = vld [vmem:[#allocation6 + $0x280] sm:$0xff]
    %v217 = vld [vmem:[#allocation6 + $0x288] sm:$0xff]
    %v218 = vld [vmem:[#allocation6 + $0x290] sm:$0xff]
    %v219 = vld [vmem:[#allocation6 + $0x298] sm:$0xff]
    %v220 = vld [vmem:[#allocation6 + $0x2a0] sm:$0xff]
    %v221 = vld [vmem:[#allocation6 + $0x2a8] sm:$0xff]
    %v222 = vld [vmem:[#allocation6 + $0x2b0] sm:$0xff]
    %v223 = vld [vmem:[#allocation6 + $0x2b8] sm:$0xff]
    %v224 = vld [vmem:[#allocation6 + $0x2c0] sm:$0xff]
    %v225 = vld [vmem:[#allocation6 + $0x2c8] sm:$0xff]
    %v226 = vld [vmem:[#allocation6 + $0x2d0] sm:$0xff]
    %v227 = vld [vmem:[#allocation6 + $0x2d8] sm:$0xff]
    %v228 = vld [vmem:[#allocation6 + $0x2e0] sm:$0xff]
    %v229 = vld [vmem:[#allocation6 + $0x2e8] sm:$0xff]
    %v230 = vld [vmem:[#allocation6 + $0x2f0] sm:$0xff]
    %v231 = vld [vmem:[#allocation6 + $0x2f8] sm:$0xff]
    %v232 = vld [vmem:[#allocation6 + $0x300] sm:$0xff]
    %v233 = vld [vmem:[#allocation6 + $0x308] sm:$0xff]
    %v234 = vld [vmem:[#allocation6 + $0x310] sm:$0xff]
    %v235 = vld [vmem:[#allocation6 + $0x318] sm:$0xff]
    %v236 = vld [vmem:[#allocation6 + $0x320] sm:$0xff]
    %v237 = vld [vmem:[#allocation6 + $0x328] sm:$0xff]
    %v238 = vld [vmem:[#allocation6 + $0x330] sm:$0xff]
    %v239 = vld [vmem:[#allocation6 + $0x338] sm:$0xff]
    %v240 = vld [vmem:[#allocation6 + $0x340] sm:$0xff]
    %v241 = vld [vmem:[#allocation6 + $0x348] sm:$0xff]
    %v242 = vld [vmem:[#allocation6 + $0x350] sm:$0xff]
    %v243 = vld [vmem:[#allocation6 + $0x358] sm:$0xff]
    %v244 = vld [vmem:[#allocation6 + $0x360] sm:$0xff]
    %v245 = vld [vmem:[#allocation6 + $0x368] sm:$0xff]
    %v246 = vld [vmem:[#allocation6 + $0x370] sm:$0xff]
    %v247 = vld [vmem:[#allocation6 + $0x378] sm:$0xff]
    %v248 = vld [vmem:[#allocation6 + $0x380] sm:$0xff]
    %v249 = vld [vmem:[#allocation6 + $0x388] sm:$0xff]
    %v250 = vld [vmem:[#allocation6 + $0x390] sm:$0xff]
    %v251 = vld [vmem:[#allocation6 + $0x398] sm:$0xff]
    %v252 = vld [vmem:[#allocation6 + $0x3a0] sm:$0xff]
    %v253 = vld [vmem:[#allocation6 + $0x3a8] sm:$0xff]
    %v254 = vld [vmem:[#allocation6 + $0x3b0] sm:$0xff]
    %v255 = vld [vmem:[#allocation6 + $0x3b8] sm:$0xff]
    %v256 = vld [vmem:[#allocation6 + $0x3c0] sm:$0xff]
    %v257 = vld [vmem:[#allocation6 + $0x3c8] sm:$0xff]
    %v258 = vld [vmem:[#allocation6 + $0x3d0] sm:$0xff]
    %v259 = vld [vmem:[#allocation6 + $0x3d8] sm:$0xff]
    %v260 = vld [vmem:[#allocation6 + $0x3e0] sm:$0xff]
    %v261 = vld [vmem:[#allocation6 + $0x3e8] sm:$0xff]
    %v262 = vld [vmem:[#allocation6 + $0x3f0] sm:$0xff]
    %v263 = vld [vmem:[#allocation6 + $0x3f8] sm:$0xff]
    %v268 = vunpack.c.l.b16 %v132
    %v269 = vunpack.c.h.b16 %v132
    %v270 = vunpack.c.l.b16 %v133
    %v271 = vunpack.c.h.b16 %v133
    %v272 = vunpack.c.l.b16 %v134
    %v273 = vunpack.c.h.b16 %v134
    %v274 = vunpack.c.l.b16 %v135
    %v275 = vunpack.c.h.b16 %v135
    %v276 = vpack.c.b16 %v268, %v268
    %v277 = vpack.c.b16 %v269, %v269
    %v278 = vpack.c.b16 %v270, %v270
    %v279 = vpack.c.b16 %v271, %v271
    %v280 = vpack.c.b16 %v272, %v272
    %v281 = vpack.c.b16 %v273, %v273
    %v282 = vpack.c.b16 %v274, %v274
    %v283 = vpack.c.b16 %v275, %v275
    %v420 = vunpack.c.l.b16 %v136
    %v421 = vunpack.c.h.b16 %v136
    %v422 = vunpack.c.l.b16 %v137
    %v423 = vunpack.c.h.b16 %v137
    %v424 = vunpack.c.l.b16 %v138
    %v425 = vunpack.c.h.b16 %v138
    %v426 = vunpack.c.l.b16 %v139
    %v427 = vunpack.c.h.b16 %v139
    %v428 = vunpack.c.l.b16 %v140
    %v429 = vunpack.c.h.b16 %v140
    %v430 = vunpack.c.l.b16 %v141
    %v431 = vunpack.c.h.b16 %v141
    %v432 = vunpack.c.l.b16 %v142
    %v433 = vunpack.c.h.b16 %v142
    %v434 = vunpack.c.l.b16 %v143
    %v435 = vunpack.c.h.b16 %v143
    %v436 = vunpack.c.l.b16 %v144
    %v437 = vunpack.c.h.b16 %v144
    %v438 = vunpack.c.l.b16 %v145
    %v439 = vunpack.c.h.b16 %v145
    %v440 = vunpack.c.l.b16 %v146
    %v441 = vunpack.c.h.b16 %v146
    %v442 = vunpack.c.l.b16 %v147
    %v443 = vunpack.c.h.b16 %v147
    %v444 = vunpack.c.l.b16 %v148
    %v445 = vunpack.c.h.b16 %v148
    %v446 = vunpack.c.l.b16 %v149
    %v447 = vunpack.c.h.b16 %v149
    %v448 = vunpack.c.l.b16 %v150
    %v449 = vunpack.c.h.b16 %v150
    %v450 = vunpack.c.l.b16 %v151
    %v451 = vunpack.c.h.b16 %v151
    %v452 = vunpack.c.l.b16 %v152
    %v453 = vunpack.c.h.b16 %v152
    %v454 = vunpack.c.l.b16 %v153
    %v455 = vunpack.c.h.b16 %v153
    %v456 = vunpack.c.l.b16 %v154
    %v457 = vunpack.c.h.b16 %v154
    %v458 = vunpack.c.l.b16 %v155
    %v459 = vunpack.c.h.b16 %v155
    %v460 = vunpack.c.l.b16 %v156
    %v461 = vunpack.c.h.b16 %v156
    %v462 = vunpack.c.l.b16 %v157
    %v463 = vunpack.c.h.b16 %v157
    %v464 = vunpack.c.l.b16 %v158
    %v465 = vunpack.c.h.b16 %v158
    %v466 = vunpack.c.l.b16 %v159
    %v467 = vunpack.c.h.b16 %v159
    %v468 = vunpack.c.l.b16 %v160
    %v469 = vunpack.c.h.b16 %v160
    %v470 = vunpack.c.l.b16 %v161
    %v471 = vunpack.c.h.b16 %v161
    %v472 = vunpack.c.l.b16 %v162
    %v473 = vunpack.c.h.b16 %v162
    %v474 = vunpack.c.l.b16 %v163
    %v475 = vunpack.c.h.b16 %v163
    %v476 = vunpack.c.l.b16 %v164
    %v477 = vunpack.c.h.b16 %v164
    %v478 = vunpack.c.l.b16 %v165
    %v479 = vunpack.c.h.b16 %v165
    %v480 = vunpack.c.l.b16 %v166
    %v481 = vunpack.c.h.b16 %v166
    %v482 = vunpack.c.l.b16 %v167
    %v483 = vunpack.c.h.b16 %v167
    %v484 = vunpack.c.l.b16 %v168
    %v485 = vunpack.c.h.b16 %v168
    %v486 = vunpack.c.l.b16 %v169
    %v487 = vunpack.c.h.b16 %v169
    %v488 = vunpack.c.l.b16 %v170
    %v489 = vunpack.c.h.b16 %v170
    %v490 = vunpack.c.l.b16 %v171
    %v491 = vunpack.c.h.b16 %v171
    %v492 = vunpack.c.l.b16 %v172
    %v493 = vunpack.c.h.b16 %v172
    %v494 = vunpack.c.l.b16 %v173
    %v495 = vunpack.c.h.b16 %v173
    %v496 = vunpack.c.l.b16 %v174
    %v497 = vunpack.c.h.b16 %v174
    %v498 = vunpack.c.l.b16 %v175
    %v499 = vunpack.c.h.b16 %v175
    %v500 = vunpack.c.l.b16 %v176
    %v501 = vunpack.c.h.b16 %v176
    %v502 = vunpack.c.l.b16 %v177
    %v503 = vunpack.c.h.b16 %v177
    %v504 = vunpack.c.l.b16 %v178
    %v505 = vunpack.c.h.b16 %v178
    %v506 = vunpack.c.l.b16 %v179
    %v507 = vunpack.c.h.b16 %v179
    %v508 = vunpack.c.l.b16 %v180
    %v509 = vunpack.c.h.b16 %v180
    %v510 = vunpack.c.l.b16 %v181
    %v511 = vunpack.c.h.b16 %v181
    %v512 = vunpack.c.l.b16 %v182
    %v513 = vunpack.c.h.b16 %v182
    %v514 = vunpack.c.l.b16 %v183
    %v515 = vunpack.c.h.b16 %v183
    %v516 = vunpack.c.l.b16 %v184
    %v517 = vunpack.c.h.b16 %v184
    %v518 = vunpack.c.l.b16 %v185
    %v519 = vunpack.c.h.b16 %v185
    %v520 = vunpack.c.l.b16 %v186
    %v521 = vunpack.c.h.b16 %v186
    %v522 = vunpack.c.l.b16 %v187
    %v523 = vunpack.c.h.b16 %v187
    %v524 = vunpack.c.l.b16 %v188
    %v525 = vunpack.c.h.b16 %v188
    %v526 = vunpack.c.l.b16 %v189
    %v527 = vunpack.c.h.b16 %v189
    %v528 = vunpack.c.l.b16 %v190
    %v529 = vunpack.c.h.b16 %v190
    %v530 = vunpack.c.l.b16 %v191
    %v531 = vunpack.c.h.b16 %v191
    %v532 = vunpack.c.l.b16 %v192
    %v533 = vunpack.c.h.b16 %v192
    %v534 = vunpack.c.l.b16 %v193
    %v535 = vunpack.c.h.b16 %v193
    %v536 = vunpack.c.l.b16 %v194
    %v537 = vunpack.c.h.b16 %v194
    %v538 = vunpack.c.l.b16 %v195
    %v539 = vunpack.c.h.b16 %v195
    %v540 = vunpack.c.l.b16 %v196
    %v541 = vunpack.c.h.b16 %v196
    %v542 = vunpack.c.l.b16 %v197
    %v543 = vunpack.c.h.b16 %v197
    %v544 = vunpack.c.l.b16 %v198
    %v545 = vunpack.c.h.b16 %v198
    %v546 = vunpack.c.l.b16 %v199
    %v547 = vunpack.c.h.b16 %v199
    %v548 = vunpack.c.l.b16 %v200
    %v549 = vunpack.c.h.b16 %v200
    %v550 = vunpack.c.l.b16 %v201
    %v551 = vunpack.c.h.b16 %v201
    %v552 = vunpack.c.l.b16 %v202
    %v553 = vunpack.c.h.b16 %v202
    %v554 = vunpack.c.l.b16 %v203
    %v555 = vunpack.c.h.b16 %v203
    %v556 = vunpack.c.l.b16 %v204
    %v557 = vunpack.c.h.b16 %v204
    %v558 = vunpack.c.l.b16 %v205
    %v559 = vunpack.c.h.b16 %v205
    %v560 = vunpack.c.l.b16 %v206
    %v561 = vunpack.c.h.b16 %v206
    %v562 = vunpack.c.l.b16 %v207
    %v563 = vunpack.c.h.b16 %v207
    %v564 = vunpack.c.l.b16 %v208
    %v565 = vunpack.c.h.b16 %v208
    %v566 = vunpack.c.l.b16 %v209
    %v567 = vunpack.c.h.b16 %v209
    %v568 = vunpack.c.l.b16 %v210
    %v569 = vunpack.c.h.b16 %v210
    %v570 = vunpack.c.l.b16 %v211
    %v571 = vunpack.c.h.b16 %v211
    %v572 = vunpack.c.l.b16 %v212
    %v573 = vunpack.c.h.b16 %v212
    %v574 = vunpack.c.l.b16 %v213
    %v575 = vunpack.c.h.b16 %v213
    %v576 = vunpack.c.l.b16 %v214
    %v577 = vunpack.c.h.b16 %v214
    %v578 = vunpack.c.l.b16 %v215
    %v579 = vunpack.c.h.b16 %v215
    %v580 = vunpack.c.l.b16 %v216
    %v581 = vunpack.c.h.b16 %v216
    %v582 = vunpack.c.l.b16 %v217
    %v583 = vunpack.c.h.b16 %v217
    %v584 = vunpack.c.l.b16 %v218
    %v585 = vunpack.c.h.b16 %v218
    %v586 = vunpack.c.l.b16 %v219
    %v587 = vunpack.c.h.b16 %v219
    %v588 = vunpack.c.l.b16 %v220
    %v589 = vunpack.c.h.b16 %v220
    %v590 = vunpack.c.l.b16 %v221
    %v591 = vunpack.c.h.b16 %v221
    %v592 = vunpack.c.l.b16 %v222
    %v593 = vunpack.c.h.b16 %v222
    %v594 = vunpack.c.l.b16 %v223
    %v595 = vunpack.c.h.b16 %v223
    %v596 = vunpack.c.l.b16 %v224
    %v597 = vunpack.c.h.b16 %v224
    %v598 = vunpack.c.l.b16 %v225
    %v599 = vunpack.c.h.b16 %v225
    %v600 = vunpack.c.l.b16 %v226
    %v601 = vunpack.c.h.b16 %v226
    %v602 = vunpack.c.l.b16 %v227
    %v603 = vunpack.c.h.b16 %v227
    %v604 = vunpack.c.l.b16 %v228
    %v605 = vunpack.c.h.b16 %v228
    %v606 = vunpack.c.l.b16 %v229
    %v607 = vunpack.c.h.b16 %v229
    %v608 = vunpack.c.l.b16 %v230
    %v609 = vunpack.c.h.b16 %v230
    %v610 = vunpack.c.l.b16 %v231
    %v611 = vunpack.c.h.b16 %v231
    %v612 = vunpack.c.l.b16 %v232
    %v613 = vunpack.c.h.b16 %v232
    %v614 = vunpack.c.l.b16 %v233
    %v615 = vunpack.c.h.b16 %v233
    %v616 = vunpack.c.l.b16 %v234
    %v617 = vunpack.c.h.b16 %v234
    %v618 = vunpack.c.l.b16 %v235
    %v619 = vunpack.c.h.b16 %v235
    %v620 = vunpack.c.l.b16 %v236
    %v621 = vunpack.c.h.b16 %v236
    %v622 = vunpack.c.l.b16 %v237
    %v623 = vunpack.c.h.b16 %v237
    %v624 = vunpack.c.l.b16 %v238
    %v625 = vunpack.c.h.b16 %v238
    %v626 = vunpack.c.l.b16 %v239
    %v627 = vunpack.c.h.b16 %v239
    %v628 = vunpack.c.l.b16 %v240
    %v629 = vunpack.c.h.b16 %v240
    %v630 = vunpack.c.l.b16 %v241
    %v631 = vunpack.c.h.b16 %v241
    %v632 = vunpack.c.l.b16 %v242
    %v633 = vunpack.c.h.b16 %v242
    %v634 = vunpack.c.l.b16 %v243
    %v635 = vunpack.c.h.b16 %v243
    %v636 = vunpack.c.l.b16 %v244
    %v637 = vunpack.c.h.b16 %v244
    %v638 = vunpack.c.l.b16 %v245
    %v639 = vunpack.c.h.b16 %v245
    %v640 = vunpack.c.l.b16 %v246
    %v641 = vunpack.c.h.b16 %v246
    %v642 = vunpack.c.l.b16 %v247
    %v643 = vunpack.c.h.b16 %v247
    %v644 = vunpack.c.l.b16 %v248
    %v645 = vunpack.c.h.b16 %v248
    %v646 = vunpack.c.l.b16 %v249
    %v647 = vunpack.c.h.b16 %v249
    %v648 = vunpack.c.l.b16 %v250
    %v649 = vunpack.c.h.b16 %v250
    %v650 = vunpack.c.l.b16 %v251
    %v651 = vunpack.c.h.b16 %v251
    %v652 = vunpack.c.l.b16 %v252
    %v653 = vunpack.c.h.b16 %v252
    %v654 = vunpack.c.l.b16 %v253
    %v655 = vunpack.c.h.b16 %v253
    %v656 = vunpack.c.l.b16 %v254
    %v657 = vunpack.c.h.b16 %v254
    %v658 = vunpack.c.l.b16 %v255
    %v659 = vunpack.c.h.b16 %v255
    %v660 = vunpack.c.l.b16 %v256
    %v661 = vunpack.c.h.b16 %v256
    %v662 = vunpack.c.l.b16 %v257
    %v663 = vunpack.c.h.b16 %v257
    %v664 = vunpack.c.l.b16 %v258
    %v665 = vunpack.c.h.b16 %v258
    %v666 = vunpack.c.l.b16 %v259
    %v667 = vunpack.c.h.b16 %v259
    %v668 = vunpack.c.l.b16 %v260
    %v669 = vunpack.c.h.b16 %v260
    %v670 = vunpack.c.l.b16 %v261
    %v671 = vunpack.c.h.b16 %v261
    %v672 = vunpack.c.l.b16 %v262
    %v673 = vunpack.c.h.b16 %v262
    %v674 = vunpack.c.l.b16 %v263
    %v675 = vunpack.c.h.b16 %v263
    %v676 = vpack.c.b16 %v422, %v420
    %v677 = vpack.c.b16 %v423, %v421
    %v678 = vpack.c.b16 %v426, %v424
    %v679 = vpack.c.b16 %v427, %v425
    %v680 = vpack.c.b16 %v430, %v428
    %v681 = vpack.c.b16 %v431, %v429
    %v682 = vpack.c.b16 %v434, %v432
    %v683 = vpack.c.b16 %v435, %v433
    %v684 = vpack.c.b16 %v438, %v436
    %v685 = vpack.c.b16 %v439, %v437
    %v686 = vpack.c.b16 %v442, %v440
    %v687 = vpack.c.b16 %v443, %v441
    %v688 = vpack.c.b16 %v446, %v444
    %v689 = vpack.c.b16 %v447, %v445
    %v690 = vpack.c.b16 %v450, %v448
    %v691 = vpack.c.b16 %v451, %v449
    %v692 = vpack.c.b16 %v454, %v452
    %v693 = vpack.c.b16 %v455, %v453
    %v694 = vpack.c.b16 %v458, %v456
    %v695 = vpack.c.b16 %v459, %v457
    %v696 = vpack.c.b16 %v462, %v460
    %v697 = vpack.c.b16 %v463, %v461
    %v698 = vpack.c.b16 %v466, %v464
    %v699 = vpack.c.b16 %v467, %v465
    %v700 = vpack.c.b16 %v470, %v468
    %v701 = vpack.c.b16 %v471, %v469
    %v702 = vpack.c.b16 %v474, %v472
    %v703 = vpack.c.b16 %v475, %v473
    %v704 = vpack.c.b16 %v478, %v476
    %v705 = vpack.c.b16 %v479, %v477
    %v706 = vpack.c.b16 %v482, %v480
    %v707 = vpack.c.b16 %v483, %v481
    %v708 = vpack.c.b16 %v486, %v484
    %v709 = vpack.c.b16 %v487, %v485
    %v710 = vpack.c.b16 %v490, %v488
    %v711 = vpack.c.b16 %v491, %v489
    %v712 = vpack.c.b16 %v494, %v492
    %v713 = vpack.c.b16 %v495, %v493
    %v714 = vpack.c.b16 %v498, %v496
    %v715 = vpack.c.b16 %v499, %v497
    %v716 = vpack.c.b16 %v502, %v500
    %v717 = vpack.c.b16 %v503, %v501
    %v718 = vpack.c.b16 %v506, %v504
    %v719 = vpack.c.b16 %v507, %v505
    %v720 = vpack.c.b16 %v510, %v508
    %v721 = vpack.c.b16 %v511, %v509
    %v722 = vpack.c.b16 %v514, %v512
    %v723 = vpack.c.b16 %v515, %v513
    %v724 = vpack.c.b16 %v518, %v516
    %v725 = vpack.c.b16 %v519, %v517
    %v726 = vpack.c.b16 %v522, %v520
    %v727 = vpack.c.b16 %v523, %v521
    %v728 = vpack.c.b16 %v526, %v524
    %v729 = vpack.c.b16 %v527, %v525
    %v730 = vpack.c.b16 %v530, %v528
    %v731 = vpack.c.b16 %v531, %v529
    %v732 = vpack.c.b16 %v534, %v532
    %v733 = vpack.c.b16 %v535, %v533
    %v734 = vpack.c.b16 %v538, %v536
    %v735 = vpack.c.b16 %v539, %v537
    %v736 = vpack.c.b16 %v542, %v540
    %v737 = vpack.c.b16 %v543, %v541
    %v738 = vpack.c.b16 %v546, %v544
    %v739 = vpack.c.b16 %v547, %v545
    %v740 = vpack.c.b16 %v550, %v548
    %v741 = vpack.c.b16 %v551, %v549
    %v742 = vpack.c.b16 %v554, %v552
    %v743 = vpack.c.b16 %v555, %v553
    %v744 = vpack.c.b16 %v558, %v556
    %v745 = vpack.c.b16 %v559, %v557
    %v746 = vpack.c.b16 %v562, %v560
    %v747 = vpack.c.b16 %v563, %v561
    %v748 = vpack.c.b16 %v566, %v564
    %v749 = vpack.c.b16 %v567, %v565
    %v750 = vpack.c.b16 %v570, %v568
    %v751 = vpack.c.b16 %v571, %v569
    %v752 = vpack.c.b16 %v574, %v572
    %v753 = vpack.c.b16 %v575, %v573
    %v754 = vpack.c.b16 %v578, %v576
    %v755 = vpack.c.b16 %v579, %v577
    %v756 = vpack.c.b16 %v582, %v580
    %v757 = vpack.c.b16 %v583, %v581
    %v758 = vpack.c.b16 %v586, %v584
    %v759 = vpack.c.b16 %v587, %v585
    %v760 = vpack.c.b16 %v590, %v588
    %v761 = vpack.c.b16 %v591, %v589
    %v762 = vpack.c.b16 %v594, %v592
    %v763 = vpack.c.b16 %v595, %v593
    %v764 = vpack.c.b16 %v598, %v596
    %v765 = vpack.c.b16 %v599, %v597
    %v766 = vpack.c.b16 %v602, %v600
    %v767 = vpack.c.b16 %v603, %v601
    %v768 = vpack.c.b16 %v606, %v604
    %v769 = vpack.c.b16 %v607, %v605
    %v770 = vpack.c.b16 %v610, %v608
    %v771 = vpack.c.b16 %v611, %v609
    %v772 = vpack.c.b16 %v614, %v612
    %v773 = vpack.c.b16 %v615, %v613
    %v774 = vpack.c.b16 %v618, %v616
    %v775 = vpack.c.b16 %v619, %v617
    %v776 = vpack.c.b16 %v622, %v620
    %v777 = vpack.c.b16 %v623, %v621
    %v778 = vpack.c.b16 %v626, %v624
    %v779 = vpack.c.b16 %v627, %v625
    %v780 = vpack.c.b16 %v630, %v628
    %v781 = vpack.c.b16 %v631, %v629
    %v782 = vpack.c.b16 %v634, %v632
    %v783 = vpack.c.b16 %v635, %v633
    %v784 = vpack.c.b16 %v638, %v636
    %v785 = vpack.c.b16 %v639, %v637
    %v786 = vpack.c.b16 %v642, %v640
    %v787 = vpack.c.b16 %v643, %v641
    %v788 = vpack.c.b16 %v646, %v644
    %v789 = vpack.c.b16 %v647, %v645
    %v790 = vpack.c.b16 %v650, %v648
    %v791 = vpack.c.b16 %v651, %v649
    %v792 = vpack.c.b16 %v654, %v652
    %v793 = vpack.c.b16 %v655, %v653
    %v794 = vpack.c.b16 %v658, %v656
    %v795 = vpack.c.b16 %v659, %v657
    %v796 = vpack.c.b16 %v662, %v660
    %v797 = vpack.c.b16 %v663, %v661
    %v798 = vpack.c.b16 %v666, %v664
    %v799 = vpack.c.b16 %v667, %v665
    %v800 = vpack.c.b16 %v670, %v668
    %v801 = vpack.c.b16 %v671, %v669
    %v802 = vpack.c.b16 %v674, %v672
    %v803 = vpack.c.b16 %v675, %v673
    %932 = vmatpush.bf16.msra.mxu0 %v690
    %933 = vmatpush.bf16.msra.mxu0 %v688
    %934 = vmatpush.bf16.msra.mxu0 %v686
    %935 = vmatpush.bf16.msra.mxu0 %v684
    %936 = vmatpush.bf16.msra.mxu0 %v682
    %937 = vmatpush.bf16.msra.mxu0 %v680
    %938 = vmatpush.bf16.msra.mxu0 %v678
    %939 = vmatpush.bf16.msra.mxu0 %v676
    %940 = vmatmul.bf16.gmra.mxu0 %v276
    %v941 = vpop.f32.mrf.mxu0
    %v942 = vadd.f32 0.0, %v941
    %v943 = vpop.f32.mrf.mxu0
    %944 = vdwg.mxu0
    %945 = vmatpush.bf16.msra.mxu0 %v706
    %946 = vmatpush.bf16.msra.mxu0 %v704
    %947 = vmatpush.bf16.msra.mxu0 %v702
    %948 = vmatpush.bf16.msra.mxu0 %v700
    %949 = vmatpush.bf16.msra.mxu0 %v698
    %950 = vmatpush.bf16.msra.mxu0 %v696
    %951 = vmatpush.bf16.msra.mxu0 %v694
    %952 = vmatpush.bf16.msra.mxu0 %v692
    %953 = vmatmul.bf16.gmra.mxu0 %v277
    %v954 = vpop.f32.mrf.mxu0
    %v955 = vadd.f32 %v942, %v954
    %v956 = vpop.f32.mrf.mxu0
    %957 = vdwg.mxu0
    %958 = vmatpush.bf16.msra.mxu0 %v722
    %959 = vmatpush.bf16.msra.mxu0 %v720
    %960 = vmatpush.bf16.msra.mxu0 %v718
    %961 = vmatpush.bf16.msra.mxu0 %v716
    %962 = vmatpush.bf16.msra.mxu0 %v714
    %963 = vmatpush.bf16.msra.mxu0 %v712
    %964 = vmatpush.bf16.msra.mxu0 %v710
    %965 = vmatpush.bf16.msra.mxu0 %v708
    %966 = vmatmul.bf16.gmra.mxu0 %v278
    %v967 = vpop.f32.mrf.mxu0
    %v968 = vadd.f32 %v955, %v967
    %v969 = vpop.f32.mrf.mxu0
    %970 = vdwg.mxu0
    %971 = vmatpush.bf16.msra.mxu0 %v738
    %972 = vmatpush.bf16.msra.mxu0 %v736
    %973 = vmatpush.bf16.msra.mxu0 %v734
    %974 = vmatpush.bf16.msra.mxu0 %v732
    %975 = vmatpush.bf16.msra.mxu0 %v730
    %976 = vmatpush.bf16.msra.mxu0 %v728
    %977 = vmatpush.bf16.msra.mxu0 %v726
    %978 = vmatpush.bf16.msra.mxu0 %v724
    %979 = vmatmul.bf16.gmra.mxu0 %v279
    %v980 = vpop.f32.mrf.mxu0
    %v981 = vadd.f32 %v968, %v980
    %v982 = vpop.f32.mrf.mxu0
    %983 = vdwg.mxu0
    %984 = vmatpush.bf16.msra.mxu0 %v754
    %985 = vmatpush.bf16.msra.mxu0 %v752
    %986 = vmatpush.bf16.msra.mxu0 %v750
    %987 = vmatpush.bf16.msra.mxu0 %v748
    %988 = vmatpush.bf16.msra.mxu0 %v746
    %989 = vmatpush.bf16.msra.mxu0 %v744
    %990 = vmatpush.bf16.msra.mxu0 %v742
    %991 = vmatpush.bf16.msra.mxu0 %v740
    %992 = vmatmul.bf16.gmra.mxu0 %v280
    %v993 = vpop.f32.mrf.mxu0
    %v994 = vadd.f32 %v981, %v993
    %v995 = vpop.f32.mrf.mxu0
    %996 = vdwg.mxu0
    %997 = vmatpush.bf16.msra.mxu0 %v770
    %998 = vmatpush.bf16.msra.mxu0 %v768
    %999 = vmatpush.bf16.msra.mxu0 %v766
    %1000 = vmatpush.bf16.msra.mxu0 %v764
    %1001 = vmatpush.bf16.msra.mxu0 %v762
    %1002 = vmatpush.bf16.msra.mxu0 %v760
    %1003 = vmatpush.bf16.msra.mxu0 %v758
    %1004 = vmatpush.bf16.msra.mxu0 %v756
    %1005 = vmatmul.bf16.gmra.mxu0 %v281
    %v1006 = vpop.f32.mrf.mxu0
    %v1007 = vadd.f32 %v994, %v1006
    %v1008 = vpop.f32.mrf.mxu0
    %1009 = vdwg.mxu0
    %1010 = vmatpush.bf16.msra.mxu0 %v786
    %1011 = vmatpush.bf16.msra.mxu0 %v784
    %1012 = vmatpush.bf16.msra.mxu0 %v782
    %1013 = vmatpush.bf16.msra.mxu0 %v780
    %1014 = vmatpush.bf16.msra.mxu0 %v778
    %1015 = vmatpush.bf16.msra.mxu0 %v776
    %1016 = vmatpush.bf16.msra.mxu0 %v774
    %1017 = vmatpush.bf16.msra.mxu0 %v772
    %1018 = vmatmul.bf16.gmra.mxu0 %v282
    %v1019 = vpop.f32.mrf.mxu0
    %v1020 = vadd.f32 %v1007, %v1019
    %v1021 = vpop.f32.mrf.mxu0
    %1022 = vdwg.mxu0
    %1023 = vmatpush.bf16.msra.mxu0 %v802
    %1024 = vmatpush.bf16.msra.mxu0 %v800
    %1025 = vmatpush.bf16.msra.mxu0 %v798
    %1026 = vmatpush.bf16.msra.mxu0 %v796
    %1027 = vmatpush.bf16.msra.mxu0 %v794
    %1028 = vmatpush.bf16.msra.mxu0 %v792
    %1029 = vmatpush.bf16.msra.mxu0 %v790
    %1030 = vmatpush.bf16.msra.mxu0 %v788
    %1031 = vmatmul.bf16.gmra.mxu0 %v283
    %v1032 = vpop.f32.mrf.mxu0
    %v1033 = vadd.f32 %v1020, %v1032
    %v1034 = vpop.f32.mrf.mxu0
    %1035 = vdwg.mxu0
    %1036 = vmatpush.bf16.msra.mxu0 %v691
    %1037 = vmatpush.bf16.msra.mxu0 %v689
    %1038 = vmatpush.bf16.msra.mxu0 %v687
    %1039 = vmatpush.bf16.msra.mxu0 %v685
    %1040 = vmatpush.bf16.msra.mxu0 %v683
    %1041 = vmatpush.bf16.msra.mxu0 %v681
    %1042 = vmatpush.bf16.msra.mxu0 %v679
    %1043 = vmatpush.bf16.msra.mxu0 %v677
    %1044 = vmatmul.bf16.gmra.mxu0 %v276
    %v1045 = vpop.f32.mrf.mxu0
    %v1046 = vadd.f32 0.0, %v1045
    %v1047 = vpop.f32.mrf.mxu0
    %1048 = vdwg.mxu0
    %1049 = vmatpush.bf16.msra.mxu0 %v707
    %1050 = vmatpush.bf16.msra.mxu0 %v705
    %1051 = vmatpush.bf16.msra.mxu0 %v703
    %1052 = vmatpush.bf16.msra.mxu0 %v701
    %1053 = vmatpush.bf16.msra.mxu0 %v699
    %1054 = vmatpush.bf16.msra.mxu0 %v697
    %1055 = vmatpush.bf16.msra.mxu0 %v695
    %1056 = vmatpush.bf16.msra.mxu0 %v693
    %1057 = vmatmul.bf16.gmra.mxu0 %v277
    %v1058 = vpop.f32.mrf.mxu0
    %v1059 = vadd.f32 %v1046, %v1058
    %v1060 = vpop.f32.mrf.mxu0
    %1061 = vdwg.mxu0
    %1062 = vmatpush.bf16.msra.mxu0 %v723
    %1063 = vmatpush.bf16.msra.mxu0 %v721
    %1064 = vmatpush.bf16.msra.mxu0 %v719
    %1065 = vmatpush.bf16.msra.mxu0 %v717
    %1066 = vmatpush.bf16.msra.mxu0 %v715
    %1067 = vmatpush.bf16.msra.mxu0 %v713
    %1068 = vmatpush.bf16.msra.mxu0 %v711
    %1069 = vmatpush.bf16.msra.mxu0 %v709
    %1070 = vmatmul.bf16.gmra.mxu0 %v278
    %v1071 = vpop.f32.mrf.mxu0
    %v1072 = vadd.f32 %v1059, %v1071
    %v1073 = vpop.f32.mrf.mxu0
    %1074 = vdwg.mxu0
    %1075 = vmatpush.bf16.msra.mxu0 %v739
    %1076 = vmatpush.bf16.msra.mxu0 %v737
    %1077 = vmatpush.bf16.msra.mxu0 %v735
    %1078 = vmatpush.bf16.msra.mxu0 %v733
    %1079 = vmatpush.bf16.msra.mxu0 %v731
    %1080 = vmatpush.bf16.msra.mxu0 %v729
    %1081 = vmatpush.bf16.msra.mxu0 %v727
    %1082 = vmatpush.bf16.msra.mxu0 %v725
    %1083 = vmatmul.bf16.gmra.mxu0 %v279
    %v1084 = vpop.f32.mrf.mxu0
    %v1085 = vadd.f32 %v1072, %v1084
    %v1086 = vpop.f32.mrf.mxu0
    %1087 = vdwg.mxu0
    %1088 = vmatpush.bf16.msra.mxu0 %v755
    %1089 = vmatpush.bf16.msra.mxu0 %v753
    %1090 = vmatpush.bf16.msra.mxu0 %v751
    %1091 = vmatpush.bf16.msra.mxu0 %v749
    %1092 = vmatpush.bf16.msra.mxu0 %v747
    %1093 = vmatpush.bf16.msra.mxu0 %v745
    %1094 = vmatpush.bf16.msra.mxu0 %v743
    %1095 = vmatpush.bf16.msra.mxu0 %v741
    %1096 = vmatmul.bf16.gmra.mxu0 %v280
    %v1097 = vpop.f32.mrf.mxu0
    %v1098 = vadd.f32 %v1085, %v1097
    %v1099 = vpop.f32.mrf.mxu0
    %1100 = vdwg.mxu0
    %1101 = vmatpush.bf16.msra.mxu0 %v771
    %1102 = vmatpush.bf16.msra.mxu0 %v769
    %1103 = vmatpush.bf16.msra.mxu0 %v767
    %1104 = vmatpush.bf16.msra.mxu0 %v765
    %1105 = vmatpush.bf16.msra.mxu0 %v763
    %1106 = vmatpush.bf16.msra.mxu0 %v761
    %1107 = vmatpush.bf16.msra.mxu0 %v759
    %1108 = vmatpush.bf16.msra.mxu0 %v757
    %1109 = vmatmul.bf16.gmra.mxu0 %v281
    %v1110 = vpop.f32.mrf.mxu0
    %v1111 = vadd.f32 %v1098, %v1110
    %v1112 = vpop.f32.mrf.mxu0
    %1113 = vdwg.mxu0
    %1114 = vmatpush.bf16.msra.mxu0 %v787
    %1115 = vmatpush.bf16.msra.mxu0 %v785
    %1116 = vmatpush.bf16.msra.mxu0 %v783
    %1117 = vmatpush.bf16.msra.mxu0 %v781
    %1118 = vmatpush.bf16.msra.mxu0 %v779
    %1119 = vmatpush.bf16.msra.mxu0 %v777
    %1120 = vmatpush.bf16.msra.mxu0 %v775
    %1121 = vmatpush.bf16.msra.mxu0 %v773
    %1122 = vmatmul.bf16.gmra.mxu0 %v282
    %v1123 = vpop.f32.mrf.mxu0
    %v1124 = vadd.f32 %v1111, %v1123
    %v1125 = vpop.f32.mrf.mxu0
    %1126 = vdwg.mxu0
    %1127 = vmatpush.bf16.msra.mxu0 %v803
    %1128 = vmatpush.bf16.msra.mxu0 %v801
    %1129 = vmatpush.bf16.msra.mxu0 %v799
    %1130 = vmatpush.bf16.msra.mxu0 %v797
    %1131 = vmatpush.bf16.msra.mxu0 %v795
    %1132 = vmatpush.bf16.msra.mxu0 %v793
    %1133 = vmatpush.bf16.msra.mxu0 %v791
    %1134 = vmatpush.bf16.msra.mxu0 %v789
    %1135 = vmatmul.bf16.gmra.mxu0 %v283
    %v1136 = vpop.f32.mrf.mxu0
    %v1137 = vadd.f32 %v1124, %v1136
    %v1138 = vpop.f32.mrf.mxu0
    %1139 = vdwg.mxu0
    %v1140 = vadd.f32 %v130, %v1033
    %v1141 = vadd.f32 %v131, %v1137
    %1142 = vst [vmem:[#allocation2] sm:$0xff] %v1140
    %1143 = vst [vmem:[#allocation2 + $0x8] sm:$0xff] %v1141
    // Predicated region
    $region62: #{tpu_custom_call.1} parent=1 // pred_check
      %p1144 = pneg %p118
    $region63: #{tpu_custom_call.1} parent=1 // pred_check_branch
      %1146 = sbr.rel (%p1144) target = $region65
    $region64: #{tpu_custom_call.1} parent=1 // pred_region
      %v1147 = vld [vmem:[#allocation2] sm:$0xff]
      %v1148 = vld [vmem:[#allocation2 + $0x8] sm:$0xff]
      %v1149 = vmax.f32 %v1147, 0.0
      %v1150 = vmax.f32 %v1148, 0.0
      %v1151 = vpack.c.bf16 %v1149, %v1149
      %v1152 = vpack.c.bf16 %v1150, %v1150
      %v1153 = vld [vmem:[#allocation9] sm:$0xf]
      %v1154 = vld [vmem:[#allocation9 + $0x4] sm:$0xf]
      %v1155 = vld [vmem:[#allocation9 + $0x8] sm:$0xf]
      %v1156 = vld [vmem:[#allocation9 + $0xc] sm:$0xf]
      %v1157 = vld [vmem:[#allocation9 + $0x10] sm:$0xf]
      %v1158 = vld [vmem:[#allocation9 + $0x14] sm:$0xf]
      %v1159 = vld [vmem:[#allocation9 + $0x18] sm:$0xf]
      %v1160 = vld [vmem:[#allocation9 + $0x1c] sm:$0xf]
      %v1161 = vld [vmem:[#allocation9 + $0x20] sm:$0xf]
      %v1162 = vld [vmem:[#allocation9 + $0x24] sm:$0xf]
      %v1163 = vld [vmem:[#allocation9 + $0x28] sm:$0xf]
      %v1164 = vld [vmem:[#allocation9 + $0x2c] sm:$0xf]
      %v1165 = vld [vmem:[#allocation9 + $0x30] sm:$0xf]
      %v1166 = vld [vmem:[#allocation9 + $0x34] sm:$0xf]
      %v1167 = vld [vmem:[#allocation9 + $0x38] sm:$0xf]
      %v1168 = vld [vmem:[#allocation9 + $0x3c] sm:$0xf]
      %v1169 = vld [vmem:[#allocation9 + $0x40] sm:$0xf]
      %v1170 = vld [vmem:[#allocation9 + $0x44] sm:$0xf]
      %v1171 = vld [vmem:[#allocation9 + $0x48] sm:$0xf]
      %v1172 = vld [vmem:[#allocation9 + $0x4c] sm:$0xf]
      %v1173 = vld [vmem:[#allocation9 + $0x50] sm:$0xf]
      %v1174 = vld [vmem:[#allocation9 + $0x54] sm:$0xf]
      %v1175 = vld [vmem:[#allocation9 + $0x58] sm:$0xf]
      %v1176 = vld [vmem:[#allocation9 + $0x5c] sm:$0xf]
      %v1177 = vld [vmem:[#allocation9 + $0x60] sm:$0xf]
      %v1178 = vld [vmem:[#allocation9 + $0x64] sm:$0xf]
      %v1179 = vld [vmem:[#allocation9 + $0x68] sm:$0xf]
      %v1180 = vld [vmem:[#allocation9 + $0x6c] sm:$0xf]
      %v1181 = vld [vmem:[#allocation9 + $0x70] sm:$0xf]
      %v1182 = vld [vmem:[#allocation9 + $0x74] sm:$0xf]
      %v1183 = vld [vmem:[#allocation9 + $0x78] sm:$0xf]
      %v1184 = vld [vmem:[#allocation9 + $0x7c] sm:$0xf]
      %v1185 = vld [vmem:[%s4] sm:$0x1]
      %v1187 = vperm.slane %v1185, 0
      %v1221 = vunpack.c.l.b16 %v1153
      %v1222 = vunpack.c.l.b16 %v1154
      %v1223 = vunpack.c.l.b16 %v1155
      %v1224 = vunpack.c.l.b16 %v1156
      %v1225 = vunpack.c.l.b16 %v1157
      %v1226 = vunpack.c.l.b16 %v1158
      %v1227 = vunpack.c.l.b16 %v1159
      %v1228 = vunpack.c.l.b16 %v1160
      %v1229 = vunpack.c.l.b16 %v1161
      %v1230 = vunpack.c.l.b16 %v1162
      %v1231 = vunpack.c.l.b16 %v1163
      %v1232 = vunpack.c.l.b16 %v1164
      %v1233 = vunpack.c.l.b16 %v1165
      %v1234 = vunpack.c.l.b16 %v1166
      %v1235 = vunpack.c.l.b16 %v1167
      %v1236 = vunpack.c.l.b16 %v1168
      %v1237 = vunpack.c.l.b16 %v1169
      %v1238 = vunpack.c.l.b16 %v1170
      %v1239 = vunpack.c.l.b16 %v1171
      %v1240 = vunpack.c.l.b16 %v1172
      %v1241 = vunpack.c.l.b16 %v1173
      %v1242 = vunpack.c.l.b16 %v1174
      %v1243 = vunpack.c.l.b16 %v1175
      %v1244 = vunpack.c.l.b16 %v1176
      %v1245 = vunpack.c.l.b16 %v1177
      %v1246 = vunpack.c.l.b16 %v1178
      %v1247 = vunpack.c.l.b16 %v1179
      %v1248 = vunpack.c.l.b16 %v1180
      %v1249 = vunpack.c.l.b16 %v1181
      %v1250 = vunpack.c.l.b16 %v1182
      %v1251 = vunpack.c.l.b16 %v1183
      %v1252 = vunpack.c.l.b16 %v1184
      %v1253 = vpack.c.b16 %v1222, %v1221
      %v1254 = vpack.c.b16 %v1224, %v1223
      %v1255 = vpack.c.b16 %v1226, %v1225
      %v1256 = vpack.c.b16 %v1228, %v1227
      %v1257 = vpack.c.b16 %v1230, %v1229
      %v1258 = vpack.c.b16 %v1232, %v1231
      %v1259 = vpack.c.b16 %v1234, %v1233
      %v1260 = vpack.c.b16 %v1236, %v1235
      %v1261 = vpack.c.b16 %v1238, %v1237
      %v1262 = vpack.c.b16 %v1240, %v1239
      %v1263 = vpack.c.b16 %v1242, %v1241
      %v1264 = vpack.c.b16 %v1244, %v1243
      %v1265 = vpack.c.b16 %v1246, %v1245
      %v1266 = vpack.c.b16 %v1248, %v1247
      %v1267 = vpack.c.b16 %v1250, %v1249
      %v1268 = vpack.c.b16 %v1252, %v1251
      %1285 = vmatpush.bf16.msra.mxu0 %v1260
      %1286 = vmatpush.bf16.msra.mxu0 %v1259
      %1287 = vmatpush.bf16.msra.mxu0 %v1258
      %1288 = vmatpush.bf16.msra.mxu0 %v1257
      %1289 = vmatpush.bf16.msra.mxu0 %v1256
      %1290 = vmatpush.bf16.msra.mxu0 %v1255
      %1291 = vmatpush.bf16.msra.mxu0 %v1254
      %1292 = vmatpush.bf16.msra.mxu0 %v1253
      %1293 = vmatmul.bf16.gmra.mxu0 %v1151
      %v1294 = vpop.f32.mrf.mxu0
      %v1295 = vadd.f32 %v1187, %v1294
      %v1296 = vpop.f32.mrf.mxu0
      %1297 = vdwg.mxu0
      %1298 = vmatpush.bf16.msra.mxu0 %v1268
      %1299 = vmatpush.bf16.msra.mxu0 %v1267
      %1300 = vmatpush.bf16.msra.mxu0 %v1266
      %1301 = vmatpush.bf16.msra.mxu0 %v1265
      %1302 = vmatpush.bf16.msra.mxu0 %v1264
      %1303 = vmatpush.bf16.msra.mxu0 %v1263
      %1304 = vmatpush.bf16.msra.mxu0 %v1262
      %1305 = vmatpush.bf16.msra.mxu0 %v1261
      %1306 = vmatmul.bf16.gmra.mxu0 %v1152
      %v1307 = vpop.f32.mrf.mxu0
      %v1308 = vadd.f32 %v1295, %v1307
      %v1309 = vpop.f32.mrf.mxu0
      %1310 = vdwg.mxu0
      %v1311 = vmax.f32 %v1308, 0.0
      %v1312 = vpack.c.bf16 %v1311, %v1311
      %v1313 = vld [vmem:[#allocation11] sm:$0xff]
      %v1314 = vld [vmem:[#allocation11 + $0x8] sm:$0xff]
      %v1315 = vld [vmem:[#allocation11 + $0x10] sm:$0xff]
      %v1316 = vld [vmem:[#allocation11 + $0x18] sm:$0xff]
      %v1317 = vld [vmem:[#allocation11 + $0x20] sm:$0xff]
      %v1318 = vld [vmem:[#allocation11 + $0x28] sm:$0xff]
      %v1319 = vld [vmem:[#allocation11 + $0x30] sm:$0xff]
      %v1320 = vld [vmem:[#allocation11 + $0x38] sm:$0xff]
      %v1321 = vld [vmem:[#allocation11 + $0x40] sm:$0xff]
      %v1322 = vld [vmem:[#allocation11 + $0x48] sm:$0xff]
      %v1323 = vld [vmem:[#allocation11 + $0x50] sm:$0xff]
      %v1324 = vld [vmem:[#allocation11 + $0x58] sm:$0xff]
      %v1325 = vld [vmem:[#allocation11 + $0x60] sm:$0xff]
      %v1326 = vld [vmem:[#allocation11 + $0x68] sm:$0xff]
      %v1327 = vld [vmem:[#allocation11 + $0x70] sm:$0xff]
      %v1328 = vld [vmem:[#allocation11 + $0x78] sm:$0xff]
      %v1329 = vld [vmem:[%s6] sm:$0x3]
      %v1331 = vperm.slane %v1329, 0
      %v1332 = vperm.slane %v1329, 1
      %v1351 = vunpack.c.l.b16 %v1313
      %v1352 = vunpack.c.h.b16 %v1313
      %v1353 = vunpack.c.l.b16 %v1314
      %v1354 = vunpack.c.h.b16 %v1314
      %v1355 = vunpack.c.l.b16 %v1315
      %v1356 = vunpack.c.h.b16 %v1315
      %v1357 = vunpack.c.l.b16 %v1316
      %v1358 = vunpack.c.h.b16 %v1316
      %v1359 = vunpack.c.l.b16 %v1317
      %v1360 = vunpack.c.h.b16 %v1317
      %v1361 = vunpack.c.l.b16 %v1318
      %v1362 = vunpack.c.h.b16 %v1318
      %v1363 = vunpack.c.l.b16 %v1319
      %v1364 = vunpack.c.h.b16 %v1319
      %v1365 = vunpack.c.l.b16 %v1320
      %v1366 = vunpack.c.h.b16 %v1320
      %v1367 = vunpack.c.l.b16 %v1321
      %v1368 = vunpack.c.h.b16 %v1321
      %v1369 = vunpack.c.l.b16 %v1322
      %v1370 = vunpack.c.h.b16 %v1322
      %v1371 = vunpack.c.l.b16 %v1323
      %v1372 = vunpack.c.h.b16 %v1323
      %v1373 = vunpack.c.l.b16 %v1324
      %v1374 = vunpack.c.h.b16 %v1324
      %v1375 = vunpack.c.l.b16 %v1325
      %v1376 = vunpack.c.h.b16 %v1325
      %v1377 = vunpack.c.l.b16 %v1326
      %v1378 = vunpack.c.h.b16 %v1326
      %v1379 = vunpack.c.l.b16 %v1327
      %v1380 = vunpack.c.h.b16 %v1327
      %v1381 = vunpack.c.l.b16 %v1328
      %v1382 = vunpack.c.h.b16 %v1328
      %v1383 = vpack.c.b16 %v1353, %v1351
      %v1384 = vpack.c.b16 %v1354, %v1352
      %v1385 = vpack.c.b16 %v1357, %v1355
      %v1386 = vpack.c.b16 %v1358, %v1356
      %v1387 = vpack.c.b16 %v1361, %v1359
      %v1388 = vpack.c.b16 %v1362, %v1360
      %v1389 = vpack.c.b16 %v1365, %v1363
      %v1390 = vpack.c.b16 %v1366, %v1364
      %v1391 = vpack.c.b16 %v1369, %v1367
      %v1392 = vpack.c.b16 %v1370, %v1368
      %v1393 = vpack.c.b16 %v1373, %v1371
      %v1394 = vpack.c.b16 %v1374, %v1372
      %v1395 = vpack.c.b16 %v1377, %v1375
      %v1396 = vpack.c.b16 %v1378, %v1376
      %v1397 = vpack.c.b16 %v1381, %v1379
      %v1398 = vpack.c.b16 %v1382, %v1380
      %1415 = vmatpush.bf16.msra.mxu0 %v1397
      %1416 = vmatpush.bf16.msra.mxu0 %v1395
      %1417 = vmatpush.bf16.msra.mxu0 %v1393
      %1418 = vmatpush.bf16.msra.mxu0 %v1391
      %1419 = vmatpush.bf16.msra.mxu0 %v1389
      %1420 = vmatpush.bf16.msra.mxu0 %v1387
      %1421 = vmatpush.bf16.msra.mxu0 %v1385
      %1422 = vmatpush.bf16.msra.mxu0 %v1383
      %1423 = vmatmul.bf16.gmra.mxu0 %v1312
      %v1424 = vpop.f32.mrf.mxu0
      %v1425 = vadd.f32 %v1331, %v1424
      %v1426 = vpop.f32.mrf.mxu0
      %1427 = vdwg.mxu0
      %1428 = vmatpush.bf16.msra.mxu0 %v1398
      %1429 = vmatpush.bf16.msra.mxu0 %v1396
      %1430 = vmatpush.bf16.msra.mxu0 %v1394
      %1431 = vmatpush.bf16.msra.mxu0 %v1392
      %1432 = vmatpush.bf16.msra.mxu0 %v1390
      %1433 = vmatpush.bf16.msra.mxu0 %v1388
      %1434 = vmatpush.bf16.msra.mxu0 %v1386
      %1435 = vmatpush.bf16.msra.mxu0 %v1384
      %1436 = vmatmul.bf16.gmra.mxu0 %v1312
      %v1437 = vpop.f32.mrf.mxu0
      %v1438 = vadd.f32 %v1332, %v1437
      %v1439 = vpop.f32.mrf.mxu0
      %1440 = vdwg.mxu0
      %v1441 = vmax.f32 %v1438, 0.0
      %vm1442 = vcmp.ne.f32.partialorder %v1438, %v1438
      %v1443 = vadd.f32 %v1438, 0.0
      %v1444 = vand.u32 2147483647, %v1438
      %v1445 = vsub.f32 0.0, %v1444
      %v1446 = vmul.f32 %v1445, 1.442695
      %v1447 = vpow.pop %v1446
      %v1448 = vadd.f32 %v1447, 1.0
      %v1449 = vlog2.pop %v1448
      %v1450 = vmul.f32 %v1449, 0.6931472
      %v1451 = vmul.f32 -0.5, %v1447
      %v1452 = vadd.f32 %v1451, 1.0
      %v1453 = vmul.f32 %v1452, %v1447
      %v1454 = vand.u32 2147483647, %v1447
      %vm1455 = vcmp.lt.f32.partialorder %v1454, 0.0004427343
      %v1456 = vsel %vm1455, %v1453, %v1450
      %v1457 = vadd.f32 %v1441, %v1456
      %v1458 = vsel %vm1442, %v1443, %v1457
      %v1459 = vadd.f32 %v1458, 1e-07
      %v1460 = vld [vmem:[#allocation12] sm:$0xff]
      %v1461 = vmul.f32 %v1459, %v1460
      %v1462 = vadd.f32 %v1425, %v1461
      %1463 = vst [vmem:[#allocation14] sm:$0xff] %v1425
      %1464 = vst [vmem:[#allocation14 + $0x8] sm:$0xff] %v1459
      %1465 = vst [vmem:[#allocation14 + $0x10] sm:$0xff] %v1462
    $region65: #{tpu_custom_call.1} parent=1 // pred_fallthru
      _
    // Predicated region
    $region66: #{tpu_custom_call.1} parent=1 // pred_check
      _
    $region67: #{tpu_custom_call.1} parent=1 // pred_check_branch
      %1467 = sbr.rel (0) target = $region69
    $region68: #{tpu_custom_call.1} parent=1 // pred_region
      %1469 = vsyncadd [#allocation5], 0
      %s1471 = sshll.u32 [#allocation14], 4
      %s1472 = int_to_ptr.vmem [resolvable:$true] %s1471
      %s1473 = sshll.u32 %s8, 4
      %s1474 = int_to_ptr.hbm [resolvable:$true] %s1473
      %1476 = dma.vmem_to_hbm [thread:$0]  %s1472, 384, %s1474, [#allocation5]
    $region69: #{tpu_custom_call.1} parent=1 // pred_fallthru
      _
    // Predicated region
    $region70: #{tpu_custom_call.1} parent=1 // pred_check
      _
    $region71: #{tpu_custom_call.1} parent=1 // pred_check_branch
      %1478 = sbr.rel (0) target = $region73
    $region72: #{tpu_custom_call.1} parent=1 // pred_region
      %1480 = dma.done [#allocation5], 384
    $region73: #{tpu_custom_call.1} parent=1 // pred_fallthru
      _
    %1481 = vsyncpa [#allocation4], 1
    %1482 = vsyncpa [#allocation7], 1
    %1483 = vsyncpa [#allocation10], 1
    %1484 = vsyncpa [#allocation13], 1
    %1485 = vsyncpa [#allocation5], 1

</llo_original>
